<compile_context>
chip_gen: v7x
topology: tpu7x:2x2x1
jax: 0.10.0
libtpu: 0.0.40
codegen_flags: <defaults>
</compile_context>

<pallas_src>
import functools

import jax
import jax.numpy as jnp
from jax.experimental import pallas as pl
from jax.experimental.pallas import tpu as pltpu

LANE = 128
SUBLANE = 8


def _round_up(x, m):
    return (x + m - 1) // m * m


def _prefer_256_hidden_align():
    """256-wide MXU (v6e/v7x) -> align real hidden dims >128 to 256."""
    try:
        kind = jax.devices()[0].device_kind.lower()
        return not any(v in kind for v in ("v2", "v3", "v4", "v5"))
    except Exception:
        return False


def _fcblock_kernel(*refs, num_mid, relu_last, compute_dtype):
    # refs (num_mid > 0):  x, w_first, b_first, w_mid, b_mid, w_last, b_last, out
    # refs (num_mid == 0): x, w_first, b_first, w_last, b_last, out
    if num_mid > 0:
        (x_ref, wf_ref, bf_ref, wm_ref, bm_ref, wl_ref, bl_ref, o_ref) = refs
    else:
        (x_ref, wf_ref, bf_ref, wl_ref, bl_ref, o_ref) = refs
        wm_ref = bm_ref = None

    # ---- first layer: Linear + ReLU (x already in compute dtype) ----
    y = jnp.dot(x_ref[...], wf_ref[...], preferred_element_type=jnp.float32)
    y = jnp.maximum(y + bf_ref[...], 0.0)                 # (tm, Phid) f32

    # ---- hidden layers: Linear + ReLU, statically unrolled ----
    if num_mid > 0:
        bm_all = bm_ref[...]                               # hoisted bias load
        for l in range(num_mid):
            y = jnp.dot(y.astype(compute_dtype), wm_ref[l],
                        preferred_element_type=jnp.float32)
            y = jnp.maximum(y + bm_all[l], 0.0)

    # ---- last layer: Linear (+ ReLU unless outermost_linear) ----
    y = jnp.dot(y.astype(compute_dtype), wl_ref[...],
                preferred_element_type=jnp.float32)
    y = y + bl_ref[...]
    if relu_last:
        y = jnp.maximum(y, 0.0)
    o_ref[...] = y.astype(o_ref.dtype)


def fcblock_forward(params, x, outermost_linear=False, *, tm=512,
                    bf16_matmul=True):
    """Fused FCBlock forward as a single Pallas TPU kernel.

    params: list of (w, b), w stored (in, out) == torch W.T.  bf16_matmul=True
    (default) runs the MXU in bf16 with f32 accumulation / bias / ReLU; expect
    ~1e-2 relative difference vs. an all-f32 torch reference.
    """
    lead = x.shape[:-1]
    in_features = x.shape[-1]
    num_layers = len(params)
    assert num_layers >= 2, "FCBlock always has a first and a last layer"
    hidden_ch = params[0][0].shape[1]
    out_features = params[-1][0].shape[1]
    num_mid = num_layers - 2
    assert params[0][0].shape[0] == in_features
    assert params[-1][0].shape[0] == hidden_ch
    for w, _ in params[1:-1]:
        assert w.shape == (hidden_ch, hidden_ch)

    compute_dtype = jnp.bfloat16 if bf16_matmul else jnp.float32
    itemsize = jnp.dtype(compute_dtype).itemsize

    # ---- per-role lane-dense pad widths ----
    Kin = _round_up(in_features, LANE)
    hid_align = 256 if (hidden_ch > LANE and _prefer_256_hidden_align()) else LANE
    Phid = _round_up(hidden_ch, hid_align)
    Pout = _round_up(out_features, LANE)

    # ---- zero-pad + pre-cast parameters (zeros keep padded lanes exactly 0) --
    wf = jnp.pad(params[0][0].astype(jnp.float32),
                 ((0, Kin - in_features), (0, Phid - hidden_ch))).astype(compute_dtype)
    bfst = jnp.pad(params[0][1].astype(jnp.float32),
                   (0, Phid - hidden_ch))[None, :]
    wl = jnp.pad(params[-1][0].astype(jnp.float32),
                 ((0, Phid - hidden_ch), (0, Pout - out_features))).astype(compute_dtype)
    blst = jnp.pad(params[-1][1].astype(jnp.float32),
                   (0, Pout - out_features))[None, :]
    if num_mid > 0:
        wm = jnp.stack([jnp.pad(w.astype(jnp.float32),
                                ((0, Phid - hidden_ch), (0, Phid - hidden_ch)))
                        for w, _ in params[1:-1]]).astype(compute_dtype)
        bm = jnp.stack([jnp.pad(b.astype(jnp.float32),
                                (0, Phid - hidden_ch))[None, :]
                        for _, b in params[1:-1]])

    # ---- rows: flatten, pick tile, pad ----
    x2d = x.reshape(-1, in_features).astype(jnp.float32)
    M = x2d.shape[0]
    tm = min(tm, _round_up(M, SUBLANE))
    if M >= 2 * SUBLANE:
        # ensure >= 2 row tiles so both TensorCores (v7x) get work
        tm = min(tm, _round_up(-(-M // 2), SUBLANE))
    Mpad = _round_up(M, tm)
    x_pad = jnp.pad(x2d, ((0, Mpad - M), (0, Kin - in_features))).astype(compute_dtype)

    grid = (Mpad // tm,)

    # ---- advisory cost estimate (padded work actually executed) ----
    w_elems = Kin * Phid + num_mid * Phid * Phid + Phid * Pout
    w_bytes = itemsize * w_elems
    b_bytes = 4 * ((1 + num_mid) * Phid + Pout)
    flops = 2 * Mpad * w_elems
    bytes_accessed = itemsize * Mpad * Kin + w_bytes + b_bytes + 4 * Mpad * Pout

    # ---- VMEM budget: resident weights (x n buffers) + pipelined act tiles ----
    act_bytes = 2 * (tm * Kin * itemsize + tm * Pout * 4)        # in/out double buffers
    tmp_bytes = 4 * tm * max(Phid, Pout) * 4                     # f32 intermediates headroom

    def vmem_limit(n_weight_buffers):
        need = n_weight_buffers * (w_bytes + b_bytes) + act_bytes + tmp_bytes
        return int(min(64 << 20, max(16 << 20, int(need * 1.25) + (2 << 20))))

    kernel = functools.partial(_fcblock_kernel, num_mid=num_mid,
                               relu_last=not outermost_linear,
                               compute_dtype=compute_dtype)

    def build_and_run(single_buffer_weights):
        wkw = ({"pipeline_mode": pl.Buffered(1)}
               if single_buffer_weights else {})
        in_specs = [pl.BlockSpec((tm, Kin), lambda i: (i, 0)),
                    pl.BlockSpec((Kin, Phid), lambda i: (0, 0), **wkw),
                    pl.BlockSpec((1, Phid), lambda i: (0, 0), **wkw)]
        args = [x_pad, wf, bfst]
        if num_mid > 0:
            in_specs += [pl.BlockSpec((num_mid, Phid, Phid),
                                      lambda i: (0, 0, 0), **wkw),
                         pl.BlockSpec((num_mid, 1, Phid),
                                      lambda i: (0, 0, 0), **wkw)]
            args += [wm, bm]
        in_specs += [pl.BlockSpec((Phid, Pout), lambda i: (0, 0), **wkw),
                     pl.BlockSpec((1, Pout), lambda i: (0, 0), **wkw)]
        args += [wl, blst]

        call = pl.pallas_call(
            kernel,
            out_shape=jax.ShapeDtypeStruct((Mpad, Pout), jnp.float32),
            grid=grid,
            in_specs=in_specs,
            out_specs=pl.BlockSpec((tm, Pout), lambda i: (i, 0)),
            compiler_params=pltpu.CompilerParams(
                dimension_semantics=("parallel",),
                vmem_limit_bytes=vmem_limit(1 if single_buffer_weights else 2)),
            cost_estimate=pl.CostEstimate(flops=int(flops), transcendentals=0,
                                          bytes_accessed=int(bytes_accessed)),
        )
        return call(*args)

    try:
        out_pad = build_and_run(single_buffer_weights=True)
    except Exception:
        # pl.Buffered(1) not supported by this jax/libtpu -> default pipelining.
        out_pad = build_and_run(single_buffer_weights=False)

    return out_pad[:M, :out_features].reshape(*lead, out_features)


def init_fcblock_params(key, hidden_ch, num_hidden_layers, in_features,
                        out_features):
    """Parameter init matching FCBlock.__init__ (kaiming_normal_ weights,
    default PyTorch Linear uniform biases).  Weights stored (in, out)."""
    dims = ([(in_features, hidden_ch)]
            + [(hidden_ch, hidden_ch)] * num_hidden_layers
            + [(hidden_ch, out_features)])
    params = []
    for fan_in, fan_out in dims:
        key, kw, kb = jax.random.split(key, 3)
        std = (2.0 / fan_in) ** 0.5
        w = std * jax.random.normal(kw, (fan_in, fan_out), jnp.float32)
        bound = 1.0 / (fan_in ** 0.5)
        b = jax.random.uniform(kb, (fan_out,), jnp.float32, -bound, bound)
        params.append((w, b))
    return params


def fcblock_reference(params, x, outermost_linear=False,
                      compute_dtype=jnp.float32):
    """Pure-JAX reference of FCBlock.forward (optionally with the same bf16
    matmul / f32 accumulate precision path as the kernel)."""
    lead = x.shape[:-1]
    h = x.reshape(-1, x.shape[-1]).astype(jnp.float32)
    n = len(params)
    for i, (w, b) in enumerate(params):
        h = jnp.dot(h.astype(compute_dtype), w.astype(compute_dtype),
                    preferred_element_type=jnp.float32) + b.astype(jnp.float32)
        if not (i == n - 1 and outermost_linear):
            h = jnp.maximum(h, 0.0)
    return h.reshape(*lead, params[-1][0].shape[1])


if __name__ == "__main__":
    key = jax.random.PRNGKey(0)

    # Small, module-consistent shapes.
    batch, seq = 2, 8
    in_features, hidden_ch, num_hidden_layers, out_features = 3, 32, 2, 4

    key, kp, kx = jax.random.split(key, 3)
    params = init_fcblock_params(kp, hidden_ch, num_hidden_layers,
                                 in_features, out_features)
    x = jax.random.normal(kx, (batch, seq, in_features), jnp.float32)

    # ---- default fast path: bf16 MXU, f32 accumulate/bias/ReLU ----
    out = fcblock_forward(params, x, outermost_linear=False)
    out = jax.block_until_ready(out)
    assert out.shape == (batch, seq, out_features), out.shape
    assert jnp.all(jnp.isfinite(out))
    assert jnp.all(out >= 0.0)          # outermost ReLU -> non-negative

    ref_bf16 = fcblock_reference(params, x, outermost_linear=False,
                                 compute_dtype=jnp.bfloat16)
    assert jnp.allclose(out, ref_bf16, atol=1e-3, rtol=1e-3), (
        float(jnp.max(jnp.abs(out - ref_bf16))))
    ref_f32 = fcblock_reference(params, x, outermost_linear=False)
    assert jnp.allclose(out, ref_f32, atol=5e-2, rtol=5e-2), (
        float(jnp.max(jnp.abs(out - ref_f32))))

    # ---- f32 path: bit-close to the all-f32 torch semantics ----
    out_f32 = fcblock_forward(params, x, outermost_linear=False,
                              bf16_matmul=False)
    out_f32 = jax.block_until_ready(out_f32)
    assert jnp.allclose(out_f32, ref_f32, atol=1e-5, rtol=1e-5), (
        float(jnp.max(jnp.abs(out_f32 - ref_f32))))

    # ---- outermost_linear=True branch ----
    out_lin = fcblock_forward(params, x, outermost_linear=True)
    out_lin = jax.block_until_ready(out_lin)
    ref_lin = fcblock_reference(params, x, outermost_linear=True,
                                compute_dtype=jnp.bfloat16)
    assert jnp.allclose(out_lin, ref_lin, atol=1e-3, rtol=1e-3), (
        float(jnp.max(jnp.abs(out_lin - ref_lin))))

    print("KERNEL_OK")
</pallas_src>

<mosaic_0001>
module attributes {stable_mosaic.version = 11 : i64} {
  func.func @_fcblock_kernel(%arg0: i32, %arg1: memref<8x128xbf16, #tpu.memory_space<vmem>>, %arg2: memref<128x128xbf16, #tpu.memory_space<vmem>>, %arg3: memref<1x128xf32, #tpu.memory_space<vmem>>, %arg4: memref<2x128x128xbf16, #tpu.memory_space<vmem>>, %arg5: memref<2x1x128xf32, #tpu.memory_space<vmem>>, %arg6: memref<128x128xbf16, #tpu.memory_space<vmem>>, %arg7: memref<1x128xf32, #tpu.memory_space<vmem>>, %arg8: memref<8x128xf32, #tpu.memory_space<vmem>>) attributes {dimension_semantics = [#tpu.dimension_semantics<parallel>], iteration_bounds = array<i64: 2>, scalar_prefetch = 0 : i64, scratch_operands = 0 : i64, tpu.core_type = #tpu.core_type<tc>, window_params = [{transform_indices = @transform_0, window_bounds = array<i64: 8, 128>}, {pipeline_mode = #tpu.pipeline_mode<synchronous>, transform_indices = @transform_1, window_bounds = array<i64: 128, 128>}, {pipeline_mode = #tpu.pipeline_mode<synchronous>, transform_indices = @transform_2, window_bounds = array<i64: 1, 128>}, {pipeline_mode = #tpu.pipeline_mode<synchronous>, transform_indices = @transform_3, window_bounds = array<i64: 2, 128, 128>}, {pipeline_mode = #tpu.pipeline_mode<synchronous>, transform_indices = @transform_4, window_bounds = array<i64: 2, 1, 128>}, {pipeline_mode = #tpu.pipeline_mode<synchronous>, transform_indices = @transform_5, window_bounds = array<i64: 128, 128>}, {pipeline_mode = #tpu.pipeline_mode<synchronous>, transform_indices = @transform_6, window_bounds = array<i64: 1, 128>}, {transform_indices = @transform_7, window_bounds = array<i64: 8, 128>}]} {
    %c0 = arith.constant 0 : index
    %c0_0 = arith.constant 0 : index
    %0 = vector.load %arg1[%c0, %c0_0] : memref<8x128xbf16, #tpu.memory_space<vmem>>, vector<8x128xbf16>
    %c0_1 = arith.constant 0 : index
    %c0_2 = arith.constant 0 : index
    %1 = vector.load %arg2[%c0_1, %c0_2] : memref<128x128xbf16, #tpu.memory_space<vmem>>, vector<128x128xbf16>
    %cst = arith.constant dense<0.000000e+00> : vector<8x128xf32>
    %2 = tpu.matmul %0, %1, %cst {dimension_numbers = #tpu.dot_dimension_numbers<[1], [0], [0], [1], [0, 0, 1, 1], [], []>} : vector<8x128xbf16>, vector<128x128xbf16>, vector<8x128xf32> -> vector<8x128xf32>
    %c0_3 = arith.constant 0 : index
    %c0_4 = arith.constant 0 : index
    %3 = vector.load %arg3[%c0_3, %c0_4] : memref<1x128xf32, #tpu.memory_space<vmem>>, vector<1x128xf32>
    %4 = vector.broadcast %3 : vector<1x128xf32> to vector<8x128xf32>
    %5 = arith.addf %2, %4 : vector<8x128xf32>
    %cst_5 = arith.constant 0.000000e+00 : f32
    %6 = vector.broadcast %cst_5 : f32 to vector<8x128xf32>
    %7 = arith.maximumf %5, %6 : vector<8x128xf32>
    %c0_6 = arith.constant 0 : index
    %c0_7 = arith.constant 0 : index
    %c0_8 = arith.constant 0 : index
    %8 = vector.load %arg5[%c0_6, %c0_7, %c0_8] : memref<2x1x128xf32, #tpu.memory_space<vmem>>, vector<2x1x128xf32>
    %9 = arith.truncf %7 : vector<8x128xf32> to vector<8x128xbf16>
    %c0_9 = arith.constant 0 : index
    %c0_10 = arith.constant 0 : index
    %c0_11 = arith.constant 0 : index
    %10 = vector.load %arg4[%c0_9, %c0_10, %c0_11] : memref<2x128x128xbf16, #tpu.memory_space<vmem>>, vector<1x128x128xbf16>
    %11 = vector.shape_cast %10 : vector<1x128x128xbf16> to vector<128x128xbf16>
    %cst_12 = arith.constant dense<0.000000e+00> : vector<8x128xf32>
    %12 = tpu.matmul %9, %11, %cst_12 {dimension_numbers = #tpu.dot_dimension_numbers<[1], [0], [0], [1], [0, 0, 1, 1], [], []>} : vector<8x128xbf16>, vector<128x128xbf16>, vector<8x128xf32> -> vector<8x128xf32>
    %13 = vector.extract_strided_slice %8 {offsets = [0, 0, 0], sizes = [1, 1, 128], strides = [1, 1, 1]} : vector<2x1x128xf32> to vector<1x1x128xf32>
    %14 = vector.shape_cast %13 : vector<1x1x128xf32> to vector<1x128xf32>
    %15 = vector.broadcast %14 : vector<1x128xf32> to vector<8x128xf32>
    %16 = arith.addf %12, %15 : vector<8x128xf32>
    %cst_13 = arith.constant 0.000000e+00 : f32
    %17 = vector.broadcast %cst_13 : f32 to vector<8x128xf32>
    %18 = arith.maximumf %16, %17 : vector<8x128xf32>
    %19 = arith.truncf %18 : vector<8x128xf32> to vector<8x128xbf16>
    %c1 = arith.constant 1 : index
    %c0_14 = arith.constant 0 : index
    %c0_15 = arith.constant 0 : index
    %20 = vector.load %arg4[%c1, %c0_14, %c0_15] : memref<2x128x128xbf16, #tpu.memory_space<vmem>>, vector<1x128x128xbf16>
    %21 = vector.shape_cast %20 : vector<1x128x128xbf16> to vector<128x128xbf16>
    %cst_16 = arith.constant dense<0.000000e+00> : vector<8x128xf32>
    %22 = tpu.matmul %19, %21, %cst_16 {dimension_numbers = #tpu.dot_dimension_numbers<[1], [0], [0], [1], [0, 0, 1, 1], [], []>} : vector<8x128xbf16>, vector<128x128xbf16>, vector<8x128xf32> -> vector<8x128xf32>
    %23 = vector.extract_strided_slice %8 {offsets = [1, 0, 0], sizes = [1, 1, 128], strides = [1, 1, 1]} : vector<2x1x128xf32> to vector<1x1x128xf32>
    %24 = vector.shape_cast %23 : vector<1x1x128xf32> to vector<1x128xf32>
    %25 = vector.broadcast %24 : vector<1x128xf32> to vector<8x128xf32>
    %26 = arith.addf %22, %25 : vector<8x128xf32>
    %cst_17 = arith.constant 0.000000e+00 : f32
    %27 = vector.broadcast %cst_17 : f32 to vector<8x128xf32>
    %28 = arith.maximumf %26, %27 : vector<8x128xf32>
    %29 = arith.truncf %28 : vector<8x128xf32> to vector<8x128xbf16>
    %c0_18 = arith.constant 0 : index
    %c0_19 = arith.constant 0 : index
    %30 = vector.load %arg6[%c0_18, %c0_19] : memref<128x128xbf16, #tpu.memory_space<vmem>>, vector<128x128xbf16>
    %cst_20 = arith.constant dense<0.000000e+00> : vector<8x128xf32>
    %31 = tpu.matmul %29, %30, %cst_20 {dimension_numbers = #tpu.dot_dimension_numbers<[1], [0], [0], [1], [0, 0, 1, 1], [], []>} : vector<8x128xbf16>, vector<128x128xbf16>, vector<8x128xf32> -> vector<8x128xf32>
    %c0_21 = arith.constant 0 : index
    %c0_22 = arith.constant 0 : index
    %32 = vector.load %arg7[%c0_21, %c0_22] : memref<1x128xf32, #tpu.memory_space<vmem>>, vector<1x128xf32>
    %33 = vector.broadcast %32 : vector<1x128xf32> to vector<8x128xf32>
    %34 = arith.addf %31, %33 : vector<8x128xf32>
    %cst_23 = arith.constant 0.000000e+00 : f32
    %35 = vector.broadcast %cst_23 : f32 to vector<8x128xf32>
    %36 = arith.maximumf %34, %35 : vector<8x128xf32>
    %c0_24 = arith.constant 0 : index
    %c0_25 = arith.constant 0 : index
    %37 = vector.load %arg8[%c0_24, %c0_25] : memref<8x128xf32, #tpu.memory_space<vmem>>, vector<8x128xf32>
    tpu.vector_store %arg8[%c0_24, %c0_25], %36 {strides = array<i32>} : memref<8x128xf32, #tpu.memory_space<vmem>>, vector<8x128xf32>,
    return
  }
  func.func @transform_0(%arg0: i32) -> (i32, i32) {
    %c0_i32 = arith.constant 0 : i32
    %c0_i32_0 = arith.constant 0 : i32
    return %arg0, %c0_i32 : i32, i32
  }
  func.func @transform_1(%arg0: i32) -> (i32, i32) {
    %c0_i32 = arith.constant 0 : i32
    %c0_i32_0 = arith.constant 0 : i32
    %c0_i32_1 = arith.constant 0 : i32
    return %c0_i32, %c0_i32_0 : i32, i32
  }
  func.func @transform_2(%arg0: i32) -> (i32, i32) {
    %c0_i32 = arith.constant 0 : i32
    %c0_i32_0 = arith.constant 0 : i32
    %c0_i32_1 = arith.constant 0 : i32
    return %c0_i32, %c0_i32_0 : i32, i32
  }
  func.func @transform_3(%arg0: i32) -> (i32, i32, i32) {
    %c0_i32 = arith.constant 0 : i32
    %c0_i32_0 = arith.constant 0 : i32
    %c0_i32_1 = arith.constant 0 : i32
    %c0_i32_2 = arith.constant 0 : i32
    return %c0_i32, %c0_i32_0, %c0_i32_1 : i32, i32, i32
  }
  func.func @transform_4(%arg0: i32) -> (i32, i32, i32) {
    %c0_i32 = arith.constant 0 : i32
    %c0_i32_0 = arith.constant 0 : i32
    %c0_i32_1 = arith.constant 0 : i32
    %c0_i32_2 = arith.constant 0 : i32
    return %c0_i32, %c0_i32_0, %c0_i32_1 : i32, i32, i32
  }
  func.func @transform_5(%arg0: i32) -> (i32, i32) {
    %c0_i32 = arith.constant 0 : i32
    %c0_i32_0 = arith.constant 0 : i32
    %c0_i32_1 = arith.constant 0 : i32
    return %c0_i32, %c0_i32_0 : i32, i32
  }
  func.func @transform_6(%arg0: i32) -> (i32, i32) {
    %c0_i32 = arith.constant 0 : i32
    %c0_i32_0 = arith.constant 0 : i32
    %c0_i32_1 = arith.constant 0 : i32
    return %c0_i32, %c0_i32_0 : i32, i32
  }
  func.func @transform_7(%arg0: i32) -> (i32, i32) {
    %c0_i32 = arith.constant 0 : i32
    %c0_i32_0 = arith.constant 0 : i32
    return %arg0, %c0_i32 : i32, i32
  }
}

module attributes {stable_mosaic.version = 11 : i64} {
  func.func @_fcblock_kernel(%arg0: i32, %arg1: memref<8x128xbf16, #tpu.memory_space<vmem>>, %arg2: memref<128x128xbf16, #tpu.memory_space<vmem>>, %arg3: memref<1x128xf32, #tpu.memory_space<vmem>>, %arg4: memref<2x128x128xbf16, #tpu.memory_space<vmem>>, %arg5: memref<2x1x128xf32, #tpu.memory_space<vmem>>, %arg6: memref<128x128xbf16, #tpu.memory_space<vmem>>, %arg7: memref<1x128xf32, #tpu.memory_space<vmem>>, %arg8: memref<8x128xf32, #tpu.memory_space<vmem>>) attributes {dimension_semantics = [#tpu.dimension_semantics<parallel>], iteration_bounds = array<i64: 2>, scalar_prefetch = 0 : i64, scratch_operands = 0 : i64, tpu.core_type = #tpu.core_type<tc>, window_params = [{transform_indices = @transform_0, window_bounds = array<i64: 8, 128>}, {pipeline_mode = #tpu.pipeline_mode<synchronous>, transform_indices = @transform_1, window_bounds = array<i64: 128, 128>}, {pipeline_mode = #tpu.pipeline_mode<synchronous>, transform_indices = @transform_2, window_bounds = array<i64: 1, 128>}, {pipeline_mode = #tpu.pipeline_mode<synchronous>, transform_indices = @transform_3, window_bounds = array<i64: 2, 128, 128>}, {pipeline_mode = #tpu.pipeline_mode<synchronous>, transform_indices = @transform_4, window_bounds = array<i64: 2, 1, 128>}, {pipeline_mode = #tpu.pipeline_mode<synchronous>, transform_indices = @transform_5, window_bounds = array<i64: 128, 128>}, {pipeline_mode = #tpu.pipeline_mode<synchronous>, transform_indices = @transform_6, window_bounds = array<i64: 1, 128>}, {transform_indices = @transform_7, window_bounds = array<i64: 8, 128>}]} {
    %c0 = arith.constant 0 : index
    %c0_0 = arith.constant 0 : index
    %0 = vector.load %arg1[%c0, %c0_0] : memref<8x128xbf16, #tpu.memory_space<vmem>>, vector<8x128xbf16>
    %c0_1 = arith.constant 0 : index
    %c0_2 = arith.constant 0 : index
    %1 = vector.load %arg2[%c0_1, %c0_2] : memref<128x128xbf16, #tpu.memory_space<vmem>>, vector<128x128xbf16>
    %cst = arith.constant dense<0.000000e+00> : vector<8x128xf32>
    %2 = tpu.matmul %0, %1, %cst {dimension_numbers = #tpu.dot_dimension_numbers<[1], [0], [0], [1], [0, 0, 1, 1], [], []>} : vector<8x128xbf16>, vector<128x128xbf16>, vector<8x128xf32> -> vector<8x128xf32>
    %c0_3 = arith.constant 0 : index
    %c0_4 = arith.constant 0 : index
    %3 = vector.load %arg3[%c0_3, %c0_4] : memref<1x128xf32, #tpu.memory_space<vmem>>, vector<1x128xf32>
    %4 = vector.broadcast %3 : vector<1x128xf32> to vector<8x128xf32>
    %5 = arith.addf %2, %4 : vector<8x128xf32>
    %cst_5 = arith.constant 0.000000e+00 : f32
    %6 = vector.broadcast %cst_5 : f32 to vector<8x128xf32>
    %7 = arith.maximumf %5, %6 : vector<8x128xf32>
    %c0_6 = arith.constant 0 : index
    %c0_7 = arith.constant 0 : index
    %c0_8 = arith.constant 0 : index
    %8 = vector.load %arg5[%c0_6, %c0_7, %c0_8] : memref<2x1x128xf32, #tpu.memory_space<vmem>>, vector<2x1x128xf32>
    %9 = arith.truncf %7 : vector<8x128xf32> to vector<8x128xbf16>
    %c0_9 = arith.constant 0 : index
    %c0_10 = arith.constant 0 : index
    %c0_11 = arith.constant 0 : index
    %10 = vector.load %arg4[%c0_9, %c0_10, %c0_11] : memref<2x128x128xbf16, #tpu.memory_space<vmem>>, vector<1x128x128xbf16>
    %11 = vector.shape_cast %10 : vector<1x128x128xbf16> to vector<128x128xbf16>
    %cst_12 = arith.constant dense<0.000000e+00> : vector<8x128xf32>
    %12 = tpu.matmul %9, %11, %cst_12 {dimension_numbers = #tpu.dot_dimension_numbers<[1], [0], [0], [1], [0, 0, 1, 1], [], []>} : vector<8x128xbf16>, vector<128x128xbf16>, vector<8x128xf32> -> vector<8x128xf32>
    %13 = vector.extract_strided_slice %8 {offsets = [0, 0, 0], sizes = [1, 1, 128], strides = [1, 1, 1]} : vector<2x1x128xf32> to vector<1x1x128xf32>
    %14 = vector.shape_cast %13 : vector<1x1x128xf32> to vector<1x128xf32>
    %15 = vector.broadcast %14 : vector<1x128xf32> to vector<8x128xf32>
    %16 = arith.addf %12, %15 : vector<8x128xf32>
    %cst_13 = arith.constant 0.000000e+00 : f32
    %17 = vector.broadcast %cst_13 : f32 to vector<8x128xf32>
    %18 = arith.maximumf %16, %17 : vector<8x128xf32>
    %19 = arith.truncf %18 : vector<8x128xf32> to vector<8x128xbf16>
    %c1 = arith.constant 1 : index
    %c0_14 = arith.constant 0 : index
    %c0_15 = arith.constant 0 : index
    %20 = vector.load %arg4[%c1, %c0_14, %c0_15] : memref<2x128x128xbf16, #tpu.memory_space<vmem>>, vector<1x128x128xbf16>
    %21 = vector.shape_cast %20 : vector<1x128x128xbf16> to vector<128x128xbf16>
    %cst_16 = arith.constant dense<0.000000e+00> : vector<8x128xf32>
    %22 = tpu.matmul %19, %21, %cst_16 {dimension_numbers = #tpu.dot_dimension_numbers<[1], [0], [0], [1], [0, 0, 1, 1], [], []>} : vector<8x128xbf16>, vector<128x128xbf16>, vector<8x128xf32> -> vector<8x128xf32>
    %23 = vector.extract_strided_slice %8 {offsets = [1, 0, 0], sizes = [1, 1, 128], strides = [1, 1, 1]} : vector<2x1x128xf32> to vector<1x1x128xf32>
    %24 = vector.shape_cast %23 : vector<1x1x128xf32> to vector<1x128xf32>
    %25 = vector.broadcast %24 : vector<1x128xf32> to vector<8x128xf32>
    %26 = arith.addf %22, %25 : vector<8x128xf32>
    %cst_17 = arith.constant 0.000000e+00 : f32
    %27 = vector.broadcast %cst_17 : f32 to vector<8x128xf32>
    %28 = arith.maximumf %26, %27 : vector<8x128xf32>
    %29 = arith.truncf %28 : vector<8x128xf32> to vector<8x128xbf16>
    %c0_18 = arith.constant 0 : index
    %c0_19 = arith.constant 0 : index
    %30 = vector.load %arg6[%c0_18, %c0_19] : memref<128x128xbf16, #tpu.memory_space<vmem>>, vector<128x128xbf16>
    %cst_20 = arith.constant dense<0.000000e+00> : vector<8x128xf32>
    %31 = tpu.matmul %29, %30, %cst_20 {dimension_numbers = #tpu.dot_dimension_numbers<[1], [0], [0], [1], [0, 0, 1, 1], [], []>} : vector<8x128xbf16>, vector<128x128xbf16>, vector<8x128xf32> -> vector<8x128xf32>
    %c0_21 = arith.constant 0 : index
    %c0_22 = arith.constant 0 : index
    %32 = vector.load %arg7[%c0_21, %c0_22] : memref<1x128xf32, #tpu.memory_space<vmem>>, vector<1x128xf32>
    %33 = vector.broadcast %32 : vector<1x128xf32> to vector<8x128xf32>
    %34 = arith.addf %31, %33 : vector<8x128xf32>
    %cst_23 = arith.constant 0.000000e+00 : f32
    %35 = vector.broadcast %cst_23 : f32 to vector<8x128xf32>
    %36 = arith.maximumf %34, %35 : vector<8x128xf32>
    %c0_24 = arith.constant 0 : index
    %c0_25 = arith.constant 0 : index
    %37 = vector.load %arg8[%c0_24, %c0_25] : memref<8x128xf32, #tpu.memory_space<vmem>>, vector<8x128xf32>
    tpu.vector_store %arg8[%c0_24, %c0_25], %36 {strides = array<i32>} : memref<8x128xf32, #tpu.memory_space<vmem>>, vector<8x128xf32>,
    return
  }
  func.func @transform_0(%arg0: i32) -> (i32, i32) {
    %c0_i32 = arith.constant 0 : i32
    %c0_i32_0 = arith.constant 0 : i32
    return %arg0, %c0_i32 : i32, i32
  }
  func.func @transform_1(%arg0: i32) -> (i32, i32) {
    %c0_i32 = arith.constant 0 : i32
    %c0_i32_0 = arith.constant 0 : i32
    %c0_i32_1 = arith.constant 0 : i32
    return %c0_i32, %c0_i32_0 : i32, i32
  }
  func.func @transform_2(%arg0: i32) -> (i32, i32) {
    %c0_i32 = arith.constant 0 : i32
    %c0_i32_0 = arith.constant 0 : i32
    %c0_i32_1 = arith.constant 0 : i32
    return %c0_i32, %c0_i32_0 : i32, i32
  }
  func.func @transform_3(%arg0: i32) -> (i32, i32, i32) {
    %c0_i32 = arith.constant 0 : i32
    %c0_i32_0 = arith.constant 0 : i32
    %c0_i32_1 = arith.constant 0 : i32
    %c0_i32_2 = arith.constant 0 : i32
    return %c0_i32, %c0_i32_0, %c0_i32_1 : i32, i32, i32
  }
  func.func @transform_4(%arg0: i32) -> (i32, i32, i32) {
    %c0_i32 = arith.constant 0 : i32
    %c0_i32_0 = arith.constant 0 : i32
    %c0_i32_1 = arith.constant 0 : i32
    %c0_i32_2 = arith.constant 0 : i32
    return %c0_i32, %c0_i32_0, %c0_i32_1 : i32, i32, i32
  }
  func.func @transform_5(%arg0: i32) -> (i32, i32) {
    %c0_i32 = arith.constant 0 : i32
    %c0_i32_0 = arith.constant 0 : i32
    %c0_i32_1 = arith.constant 0 : i32
    return %c0_i32, %c0_i32_0 : i32, i32
  }
  func.func @transform_6(%arg0: i32) -> (i32, i32) {
    %c0_i32 = arith.constant 0 : i32
    %c0_i32_0 = arith.constant 0 : i32
    %c0_i32_1 = arith.constant 0 : i32
    return %c0_i32, %c0_i32_0 : i32, i32
  }
  func.func @transform_7(%arg0: i32) -> (i32, i32) {
    %c0_i32 = arith.constant 0 : i32
    %c0_i32_0 = arith.constant 0 : i32
    return %arg0, %c0_i32 : i32, i32
  }
}

</mosaic_0001>

<llo_original>
// kernel: tpu_custom_call.1
$region0: #{tpu_custom_call.1}
  #allocation0 [shape = 'u32[]', space=smem, size = 0x4, offset = 0x4, fixed_abs, tag = 'smem constant byte address 0x4 - core index']
  #allocation1 [shape = 'u32[144,128]{1,0:T(1,128)}', space=vmem, size = 0x12000, scoped, tag = 'internal scratch']
  %s0 = inlined_call_operand.hbm [shape: bf16[16,128], index: 0, kind: input, shape index: {}]
  %s1 = inlined_call_operand.hbm [shape: bf16[128,128], index: 1, kind: input, shape index: {}]
  %s2 = inlined_call_operand.vmem [shape: f32[1,128], index: 2, kind: input, shape index: {}]
  %s3 = inlined_call_operand.hbm [shape: bf16[2,128,128], index: 3, kind: input, shape index: {}]
  %s4 = inlined_call_operand.vmem [shape: f32[2,1,128], index: 4, kind: input, shape index: {}]
  %s5 = inlined_call_operand.hbm [shape: bf16[128,128], index: 5, kind: input, shape index: {}]
  %s6 = inlined_call_operand.vmem [shape: f32[1,128], index: 6, kind: input, shape index: {}]
  %s7 = inlined_call_operand.hbm [shape: f32[16,128], index: 7, kind: output, shape index: {}]
  %s8 = sld [smem:[#allocation0]]
  $region77: #{tpu_custom_call.1} parent=0
    _
  %s10 = ssub.s32 1, %s8
  %s11 = scalar_select 0, %s10, %s8
  $region1: #{tpu_custom_call.1} parent=0
    #allocation2 [shape = 'u8[4096]{0}', space=vmem, size = 0x1000, scoped, tag = 'input window, operand 0']
    #allocation3 [shape = 's32[2]{0}', space=sflag, size = 0x8, scoped, tag = 'scoped memory for tpu_custom_call.1']
    #allocation4 [shape = 's32[2]{0}', space=sflag, size = 0x8, scoped, tag = 'scoped memory for tpu_custom_call.1']
    #allocation5 [shape = 'u8[32768]{0}', space=vmem, size = 0x8000, scoped, tag = 'input window, operand 1, single buffered']
    #allocation6 [shape = 's32[1]{0}', space=sflag, size = 0x4, scoped, tag = 'scoped memory for tpu_custom_call.1']
    #allocation7 [shape = 'u8[65536]{0}', space=vmem, size = 0x10000, scoped, tag = 'input window, operand 3, single buffered']
    #allocation8 [shape = 'u8[32768]{0}', space=vmem, size = 0x8000, scoped, tag = 'input window, operand 5, single buffered']
    #allocation9 [shape = 's32[1]{0}', space=sflag, size = 0x4, scoped, tag = 'scoped memory for tpu_custom_call.1']
    #allocation10 [shape = 'u8[8192]{0}', space=vmem, size = 0x2000, scoped, tag = 'output window, operand 0']
    %12 = vsyncpa [#allocation3], 0
    %s13 = scalar_lea.sflag [#allocation3], 1
    %14 = vsyncpa %s13, 0
    %15 = vsyncpa [#allocation6], 0
    %16 = vsyncpa [#allocation9], 0
    %17 = vsyncpa [#allocation4], 0
    %s18 = scalar_lea.sflag [#allocation4], 1
    %19 = vsyncpa %s18, 0
    loop: start=0, step=1, limit=4
    $region2: #{tpu_custom_call.1} parent=1 // loop_pre_header
      _
    $region3: #{tpu_custom_call.1} parent=1 // loop_header
      %s21 = sphi 0, %s25
      %p22 = scmp.ge.s32.totalorder %s21, 4
      %s31 = sphi 0, %s33
      %s34 = sphi 0, %s31
      %s35 = sphi 0, %s34
      %s51 = sphi 0, %s35
      %s55 = sphi 0, %s55
      %s57 = sphi 0, %s55
      %s58 = sphi 0, %s57
      %s72 = sphi 0, %s58
      %s76 = sphi 0, %s76
      %s78 = sphi 0, %s76
      %s79 = sphi 0, %s78
      %s93 = sphi 0, %s79
      %s97 = sphi 0, %s97
      %s99 = sphi 0, %s97
      %s100 = sphi 0, %s99
      %s114 = sphi 0, %s100
      %s118 = sphi 0, %s118
      %s120 = sphi 0, %s118
      %s121 = sphi 0, %s120
      %s135 = sphi 0, %s121
      %s139 = sphi 0, %s139
      %s141 = sphi 0, %s139
      %s142 = sphi 0, %s141
      %s156 = sphi 0, %s142
      %s160 = sphi 0, %s160
      %s162 = sphi 0, %s160
      %s163 = sphi 0, %s162
      %s177 = sphi 0, %s163
      %s183 = sphi 0, %s185
      %s186 = sphi 0, %s183
      %s187 = sphi 0, %s186
      %s203 = sphi 0, %s187
    $region4: #{tpu_custom_call.1} parent=1 // loop_header_branch
      %24 = sbr.rel (%p22) target = $region8
    $region5: #{tpu_custom_call.1} parent=1 // loop_body
      %s26 = ssub.s32 %s21, 1
      %s27 = ssub.s32 %s21, 2
      %s28 = sadd.s32 %s21, 1
      %s29 = ssub.s32 %s21, %s28
      %p30 = scmp.eq.s32.totalorder %s29, 0
      %s32 = sadd.s32 %s31, 1
      %s33 = scalar_select %p30, %s31, %s32
      %p36 = pneg %p30
      %p37 = scmp.eq.s32.totalorder %s21, 1
      %p38 = por %p36, %p37
      %p39 = scmp.ne.s32.totalorder %s31, %s34
      %p40 = scmp.eq.s32.totalorder %s21, 0
      %p41 = por %p39, %p40
      %p42 = scmp.ne.s32.totalorder %s31, %s34
      %p43 = scmp.eq.s32.totalorder %s26, 1
      %p44 = por %p42, %p43
      %p45 = scmp.ne.s32.totalorder %s34, %s35
      %p46 = scmp.eq.s32.totalorder %s26, 0
      %p47 = por %p45, %p46
      %p48 = scmp.ne.s32.totalorder %s34, %s35
      %p49 = scmp.eq.s32.totalorder %s27, 1
      %p50 = por %p48, %p49
      %p52 = scmp.ne.s32.totalorder %s35, %s51
      %p53 = scmp.eq.s32.totalorder %s27, 0
      %p54 = por %p52, %p53
      %s56 = sadd.s32 %s55, 1
      %p59 = scmp.eq.s32.totalorder %s21, 1
      %p60 = scmp.ne.s32.totalorder %s55, %s57
      %p61 = scmp.eq.s32.totalorder %s21, 0
      %p62 = por %p60, %p61
      %p63 = scmp.ne.s32.totalorder %s55, %s57
      %p64 = scmp.eq.s32.totalorder %s26, 1
      %p65 = por %p63, %p64
      %p66 = scmp.ne.s32.totalorder %s57, %s58
      %p67 = scmp.eq.s32.totalorder %s26, 0
      %p68 = por %p66, %p67
      %p69 = scmp.ne.s32.totalorder %s57, %s58
      %p70 = scmp.eq.s32.totalorder %s27, 1
      %p71 = por %p69, %p70
      %p73 = scmp.ne.s32.totalorder %s58, %s72
      %p74 = scmp.eq.s32.totalorder %s27, 0
      %p75 = por %p73, %p74
      %s77 = sadd.s32 %s76, 1
      %p80 = scmp.eq.s32.totalorder %s21, 1
      %p81 = scmp.ne.s32.totalorder %s76, %s78
      %p82 = scmp.eq.s32.totalorder %s21, 0
      %p83 = por %p81, %p82
      %p84 = scmp.ne.s32.totalorder %s76, %s78
      %p85 = scmp.eq.s32.totalorder %s26, 1
      %p86 = por %p84, %p85
      %p87 = scmp.ne.s32.totalorder %s78, %s79
      %p88 = scmp.eq.s32.totalorder %s26, 0
      %p89 = por %p87, %p88
      %p90 = scmp.ne.s32.totalorder %s78, %s79
      %p91 = scmp.eq.s32.totalorder %s27, 1
      %p92 = por %p90, %p91
      %p94 = scmp.ne.s32.totalorder %s79, %s93
      %p95 = scmp.eq.s32.totalorder %s27, 0
      %p96 = por %p94, %p95
      %s98 = sadd.s32 %s97, 1
      %p101 = scmp.eq.s32.totalorder %s21, 1
      %p102 = scmp.ne.s32.totalorder %s97, %s99
      %p103 = scmp.eq.s32.totalorder %s21, 0
      %p104 = por %p102, %p103
      %p105 = scmp.ne.s32.totalorder %s97, %s99
      %p106 = scmp.eq.s32.totalorder %s26, 1
      %p107 = por %p105, %p106
      %p108 = scmp.ne.s32.totalorder %s99, %s100
      %p109 = scmp.eq.s32.totalorder %s26, 0
      %p110 = por %p108, %p109
      %p111 = scmp.ne.s32.totalorder %s99, %s100
      %p112 = scmp.eq.s32.totalorder %s27, 1
      %p113 = por %p111, %p112
      %p115 = scmp.ne.s32.totalorder %s100, %s114
      %p116 = scmp.eq.s32.totalorder %s27, 0
      %p117 = por %p115, %p116
      %s119 = sadd.s32 %s118, 1
      %p122 = scmp.eq.s32.totalorder %s21, 1
      %p123 = scmp.ne.s32.totalorder %s118, %s120
      %p124 = scmp.eq.s32.totalorder %s21, 0
      %p125 = por %p123, %p124
      %p126 = scmp.ne.s32.totalorder %s118, %s120
      %p127 = scmp.eq.s32.totalorder %s26, 1
      %p128 = por %p126, %p127
      %p129 = scmp.ne.s32.totalorder %s120, %s121
      %p130 = scmp.eq.s32.totalorder %s26, 0
      %p131 = por %p129, %p130
      %p132 = scmp.ne.s32.totalorder %s120, %s121
      %p133 = scmp.eq.s32.totalorder %s27, 1
      %p134 = por %p132, %p133
      %p136 = scmp.ne.s32.totalorder %s121, %s135
      %p137 = scmp.eq.s32.totalorder %s27, 0
      %p138 = por %p136, %p137
      %s140 = sadd.s32 %s139, 1
      %p143 = scmp.eq.s32.totalorder %s21, 1
      %p144 = scmp.ne.s32.totalorder %s139, %s141
      %p145 = scmp.eq.s32.totalorder %s21, 0
      %p146 = por %p144, %p145
      %p147 = scmp.ne.s32.totalorder %s139, %s141
      %p148 = scmp.eq.s32.totalorder %s26, 1
      %p149 = por %p147, %p148
      %p150 = scmp.ne.s32.totalorder %s141, %s142
      %p151 = scmp.eq.s32.totalorder %s26, 0
      %p152 = por %p150, %p151
      %p153 = scmp.ne.s32.totalorder %s141, %s142
      %p154 = scmp.eq.s32.totalorder %s27, 1
      %p155 = por %p153, %p154
      %p157 = scmp.ne.s32.totalorder %s142, %s156
      %p158 = scmp.eq.s32.totalorder %s27, 0
      %p159 = por %p157, %p158
      %s161 = sadd.s32 %s160, 1
      %p164 = scmp.eq.s32.totalorder %s21, 1
      %p165 = scmp.ne.s32.totalorder %s160, %s162
      %p166 = scmp.eq.s32.totalorder %s21, 0
      %p167 = por %p165, %p166
      %p168 = scmp.ne.s32.totalorder %s160, %s162
      %p169 = scmp.eq.s32.totalorder %s26, 1
      %p170 = por %p168, %p169
      %p171 = scmp.ne.s32.totalorder %s162, %s163
      %p172 = scmp.eq.s32.totalorder %s26, 0
      %p173 = por %p171, %p172
      %p174 = scmp.ne.s32.totalorder %s162, %s163
      %p175 = scmp.eq.s32.totalorder %s27, 1
      %p176 = por %p174, %p175
      %p178 = scmp.ne.s32.totalorder %s163, %s177
      %p179 = scmp.eq.s32.totalorder %s27, 0
      %p180 = por %p178, %p179
      %s181 = ssub.s32 %s21, %s28
      %p182 = scmp.eq.s32.totalorder %s181, 0
      %s184 = sadd.s32 %s183, 1
      %s185 = scalar_select %p182, %s183, %s184
      %p188 = pneg %p182
      %p189 = scmp.eq.s32.totalorder %s21, 1
      %p190 = por %p188, %p189
      %p191 = scmp.ne.s32.totalorder %s183, %s186
      %p192 = scmp.eq.s32.totalorder %s21, 0
      %p193 = por %p191, %p192
      %p194 = scmp.ne.s32.totalorder %s183, %s186
      %p195 = scmp.eq.s32.totalorder %s26, 1
      %p196 = por %p194, %p195
      %p197 = scmp.ne.s32.totalorder %s186, %s187
      %p198 = scmp.eq.s32.totalorder %s26, 0
      %p199 = por %p197, %p198
      %p200 = scmp.ne.s32.totalorder %s186, %s187
      %p201 = scmp.eq.s32.totalorder %s27, 1
      %p202 = por %p200, %p201
      %p204 = scmp.ne.s32.totalorder %s187, %s203
      %p205 = scmp.eq.s32.totalorder %s27, 0
      %p206 = por %p204, %p205
      %p207 = scmp.le.s32.totalorder 1, %s21
      %p208 = scmp.lt.s32.totalorder %s21, 3
      %p209 = pnand %p207, %p208
      %p210 = pneg %p209
      // Predicated region
      $region9: #{tpu_custom_call.1} parent=5 // pred_check
        _
      $region10: #{tpu_custom_call.1} parent=5 // pred_check_branch
        %212 = sbr.rel (%p209) target = $region12
      $region11: #{tpu_custom_call.1} parent=5 // pred_region
        %s213 = ssub.s32 %s21, 1
        // Predicated region
        $region13: #{tpu_custom_call.1} parent=11 // pred_check
          %p214 = pneg %p68
        $region14: #{tpu_custom_call.1} parent=11 // pred_check_branch
          %216 = sbr.rel (%p214) target = $region16
        $region15: #{tpu_custom_call.1} parent=11 // pred_region
          %s218 = ssub.s32 1024, 1024
          %219 = vsyncadd [#allocation6], %s218
          %s220 = sshll.u32 [#allocation5], 4
          %s221 = int_to_ptr.vmem [resolvable:$true] %s220
          %226 = dma.hbm_to_vmem [thread:$0]  %s1, 1024, %s221, [#allocation6], 64, 64, 4
        $region16: #{tpu_custom_call.1} parent=11 // pred_fallthru
          _
        // Predicated region
        $region17: #{tpu_custom_call.1} parent=11 // pred_check
          %p227 = pneg %p89
        $region18: #{tpu_custom_call.1} parent=11 // pred_check_branch
          %229 = sbr.rel (%p227) target = $region20
        $region19: #{tpu_custom_call.1} parent=11 // pred_region
          _
        $region20: #{tpu_custom_call.1} parent=11 // pred_fallthru
          _
        // Predicated region
        $region21: #{tpu_custom_call.1} parent=11 // pred_check
          %p230 = pneg %p110
        $region22: #{tpu_custom_call.1} parent=11 // pred_check_branch
          %232 = sbr.rel (%p230) target = $region24
        $region23: #{tpu_custom_call.1} parent=11 // pred_region
          %s234 = ssub.s32 2048, 2048
          %235 = vsyncadd [#allocation6], %s234
          %s236 = sshll.u32 [#allocation7], 4
          %s237 = int_to_ptr.vmem [resolvable:$true] %s236
          %242 = dma.hbm_to_vmem [thread:$0]  %s3, 2048, %s237, [#allocation6], 64, 64, 4
        $region24: #{tpu_custom_call.1} parent=11 // pred_fallthru
          _
        // Predicated region
        $region25: #{tpu_custom_call.1} parent=11 // pred_check
          %p243 = pneg %p131
        $region26: #{tpu_custom_call.1} parent=11 // pred_check_branch
          %245 = sbr.rel (%p243) target = $region28
        $region27: #{tpu_custom_call.1} parent=11 // pred_region
          _
        $region28: #{tpu_custom_call.1} parent=11 // pred_fallthru
          _
        // Predicated region
        $region29: #{tpu_custom_call.1} parent=11 // pred_check
          %p246 = pneg %p152
        $region30: #{tpu_custom_call.1} parent=11 // pred_check_branch
          %248 = sbr.rel (%p246) target = $region32
        $region31: #{tpu_custom_call.1} parent=11 // pred_region
          %s250 = ssub.s32 1024, 1024
          %251 = vsyncadd [#allocation9], %s250
          %s252 = sshll.u32 [#allocation8], 4
          %s253 = int_to_ptr.vmem [resolvable:$true] %s252
          %258 = dma.hbm_to_vmem [thread:$0]  %s5, 1024, %s253, [#allocation9], 64, 64, 4
        $region32: #{tpu_custom_call.1} parent=11 // pred_fallthru
          _
        // Predicated region
        $region33: #{tpu_custom_call.1} parent=11 // pred_check
          %p259 = pneg %p173
        $region34: #{tpu_custom_call.1} parent=11 // pred_check_branch
          %261 = sbr.rel (%p259) target = $region36
        $region35: #{tpu_custom_call.1} parent=11 // pred_region
          _
        $region36: #{tpu_custom_call.1} parent=11 // pred_fallthru
          _
      $region12: #{tpu_custom_call.1} parent=5 // pred_fallthru
        _
      %p262 = scmp.lt.s32.totalorder %s21, 2
      // Predicated region
      $region37: #{tpu_custom_call.1} parent=5 // pred_check
        %p263 = pneg %p262
      $region38: #{tpu_custom_call.1} parent=5 // pred_check_branch
        %265 = sbr.rel (%p263) target = $region40
      $region39: #{tpu_custom_call.1} parent=5 // pred_region
        // Predicated region
        $region41: #{tpu_custom_call.1} parent=39 // pred_check
          %p266 = pneg %p41
        $region42: #{tpu_custom_call.1} parent=39 // pred_check_branch
          %268 = sbr.rel (%p266) target = $region44
        $region43: #{tpu_custom_call.1} parent=39 // pred_region
          %s269 = sand.u32 %s31, 1
          %s270 = scalar_lea.sflag [#allocation3], %s269
          %s271 = sand.u32 %s31, 1
          %s272 = smul.addr %s271, 4
          %s273 = scalar_lea.vmem [#allocation2], %s272
          %s275 = ssub.s32 64, 64
          %276 = vsyncadd %s270, %s275
          %s277 = smul.addr %s21, 64
          %s278 = scalar_lea.hbm %s0, %s277
          %s280 = sshll.u32 %s273, 4
          %s281 = int_to_ptr.vmem [resolvable:$true] %s280
          %283 = dma.hbm_to_vmem [thread:$0]  %s278, 64, %s281, %s270
        $region44: #{tpu_custom_call.1} parent=39 // pred_fallthru
          _
      $region40: #{tpu_custom_call.1} parent=5 // pred_fallthru
        _
      %p284 = scmp.le.s32.totalorder 1, %s21
      %p285 = scmp.lt.s32.totalorder %s21, 3
      %p286 = pnand %p284, %p285
      %p287 = pneg %p286
      // Predicated region
      $region45: #{tpu_custom_call.1} parent=5 // pred_check
        _
      $region46: #{tpu_custom_call.1} parent=5 // pred_check_branch
        %289 = sbr.rel (%p286) target = $region48
      $region47: #{tpu_custom_call.1} parent=5 // pred_region
        %s290 = ssub.s32 %s21, 1
        %s291 = sand.u32 %s34, 1
        %s292 = scalar_lea.sflag [#allocation3], %s291
        %s293 = sand.u32 %s34, 1
        %s294 = smul.addr %s293, 4
        %s295 = scalar_lea.vmem [#allocation2], %s294
        // Predicated region
        $region49: #{tpu_custom_call.1} parent=47 // pred_check
          %p296 = pneg %p47
        $region50: #{tpu_custom_call.1} parent=47 // pred_check_branch
          %298 = sbr.rel (%p296) target = $region52
        $region51: #{tpu_custom_call.1} parent=47 // pred_region
          %299 = dma.done %s292, 64
        $region52: #{tpu_custom_call.1} parent=47 // pred_fallthru
          _
        // Predicated region
        $region53: #{tpu_custom_call.1} parent=47 // pred_check
          %p300 = pneg %p68
        $region54: #{tpu_custom_call.1} parent=47 // pred_check_branch
          %302 = sbr.rel (%p300) target = $region56
        $region55: #{tpu_custom_call.1} parent=47 // pred_region
          %303 = dma.done [#allocation6], 1024
        $region56: #{tpu_custom_call.1} parent=47 // pred_fallthru
          _
        // Predicated region
        $region57: #{tpu_custom_call.1} parent=47 // pred_check
          %p304 = pneg %p110
        $region58: #{tpu_custom_call.1} parent=47 // pred_check_branch
          %306 = sbr.rel (%p304) target = $region60
        $region59: #{tpu_custom_call.1} parent=47 // pred_region
          %307 = dma.done [#allocation6], 2048
        $region60: #{tpu_custom_call.1} parent=47 // pred_fallthru
          _
        // Predicated region
        $region61: #{tpu_custom_call.1} parent=47 // pred_check
          %p308 = pneg %p152
        $region62: #{tpu_custom_call.1} parent=47 // pred_check_branch
          %310 = sbr.rel (%p308) target = $region64
        $region63: #{tpu_custom_call.1} parent=47 // pred_region
          %311 = dma.done [#allocation9], 1024
        $region64: #{tpu_custom_call.1} parent=47 // pred_fallthru
          _
        %s312 = sand.u32 %s34, 1
        %s313 = scalar_lea.sflag [#allocation3], %s312
        %s314 = sand.u32 %s34, 1
        %s315 = smul.addr %s314, 4
        %s316 = scalar_lea.vmem [#allocation2], %s315
        %p317 = pneg %p47
        %p318 = pneg %p44
        %p319 = pneg %p68
        %p320 = pneg %p65
        %p321 = pneg %p89
        %p322 = pneg %p86
        %p323 = pneg %p110
        %p324 = pneg %p107
        %p325 = pneg %p131
        %p326 = pneg %p128
        %p327 = pneg %p152
        %p328 = pneg %p149
        %p329 = pneg %p173
        %p330 = pneg %p170
        %p331 = pneg %p199
        %p332 = pneg %p196
        %s333 = sand.u32 %s186, 1
        %s334 = scalar_lea.sflag [#allocation4], %s333
        %s335 = sand.u32 %s186, 1
        %s336 = smul.addr %s335, 8
        %s337 = scalar_lea.vmem [#allocation10], %s336
        %v339 = vld [vmem:[%s295] sm:$0xf]
        %v340 = vld [vmem:[#allocation5] sm:$0xf]
        %v341 = vld [vmem:[#allocation5 + $0x4] sm:$0xf]
        %v342 = vld [vmem:[#allocation5 + $0x8] sm:$0xf]
        %v343 = vld [vmem:[#allocation5 + $0xc] sm:$0xf]
        %v344 = vld [vmem:[#allocation5 + $0x10] sm:$0xf]
        %v345 = vld [vmem:[#allocation5 + $0x14] sm:$0xf]
        %v346 = vld [vmem:[#allocation5 + $0x18] sm:$0xf]
        %v347 = vld [vmem:[#allocation5 + $0x1c] sm:$0xf]
        %v348 = vld [vmem:[#allocation5 + $0x20] sm:$0xf]
        %v349 = vld [vmem:[#allocation5 + $0x24] sm:$0xf]
        %v350 = vld [vmem:[#allocation5 + $0x28] sm:$0xf]
        %v351 = vld [vmem:[#allocation5 + $0x2c] sm:$0xf]
        %v352 = vld [vmem:[#allocation5 + $0x30] sm:$0xf]
        %v353 = vld [vmem:[#allocation5 + $0x34] sm:$0xf]
        %v354 = vld [vmem:[#allocation5 + $0x38] sm:$0xf]
        %v355 = vld [vmem:[#allocation5 + $0x3c] sm:$0xf]
        %v356 = vld [vmem:[%s2] sm:$0x1]
        %v358 = vlaneseq
        %v359 = vshrl.u32 %v358, 7
        %v360 = vsub.s32 0, %v359
        %v361 = vrot.slane %v356, %v360
        %v379 = vunpack.c.l.b16 %v340
        %v380 = vunpack.c.l.b16 %v341
        %v381 = vunpack.c.l.b16 %v342
        %v382 = vunpack.c.l.b16 %v343
        %v383 = vunpack.c.l.b16 %v344
        %v384 = vunpack.c.l.b16 %v345
        %v385 = vunpack.c.l.b16 %v346
        %v386 = vunpack.c.l.b16 %v347
        %v387 = vunpack.c.l.b16 %v348
        %v388 = vunpack.c.l.b16 %v349
        %v389 = vunpack.c.l.b16 %v350
        %v390 = vunpack.c.l.b16 %v351
        %v391 = vunpack.c.l.b16 %v352
        %v392 = vunpack.c.l.b16 %v353
        %v393 = vunpack.c.l.b16 %v354
        %v394 = vunpack.c.l.b16 %v355
        %v395 = vpack.c.b16 %v380, %v379
        %v396 = vpack.c.b16 %v382, %v381
        %v397 = vpack.c.b16 %v384, %v383
        %v398 = vpack.c.b16 %v386, %v385
        %v399 = vpack.c.b16 %v388, %v387
        %v400 = vpack.c.b16 %v390, %v389
        %v401 = vpack.c.b16 %v392, %v391
        %v402 = vpack.c.b16 %v394, %v393
        %411 = vmatprep.subr.bf16.mxu0 0
        %412 = vmatpush1.bf16.msra.mxu0 %v395
        %413 = vmatprep.subr.bf16.mxu0 0
        %414 = vmatpush1.bf16.msra.mxu0 %v396
        %415 = vmatprep.subr.bf16.mxu0 0
        %416 = vmatpush1.bf16.msra.mxu0 %v397
        %417 = vmatprep.subr.bf16.mxu0 0
        %418 = vmatpush1.bf16.msra.mxu0 %v398
        %419 = vmatprep.subr.bf16.mxu0 0
        %420 = vmatpush1.bf16.msra.mxu0 %v399
        %421 = vmatprep.subr.bf16.mxu0 0
        %422 = vmatpush1.bf16.msra.mxu0 %v400
        %423 = vmatprep.subr.bf16.mxu0 0
        %424 = vmatpush1.bf16.msra.mxu0 %v401
        %425 = vmatprep.subr.bf16.mxu0 0
        %426 = vmatpush1.bf16.msra.mxu0 %v402
        %427 = vmatprep.subr.bf16.mxu0 0
        %428 = vmatpush1.bf16.msra.mxu0 0
        %429 = vmatprep.subr.bf16.mxu0 0
        %430 = vmatpush1.bf16.msra.mxu0 0
        %431 = vmatprep.subr.bf16.mxu0 0
        %432 = vmatpush1.bf16.msra.mxu0 0
        %433 = vmatprep.subr.bf16.mxu0 0
        %434 = vmatpush1.bf16.msra.mxu0 0
        %435 = vmatprep.subr.bf16.mxu0 0
        %436 = vmatpush1.bf16.msra.mxu0 0
        %437 = vmatprep.subr.bf16.mxu0 0
        %438 = vmatpush1.bf16.msra.mxu0 0
        %439 = vmatprep.subr.bf16.mxu0 0
        %440 = vmatpush1.bf16.msra.mxu0 0
        %441 = vmatprep.subr.bf16.mxu0 0
        %442 = vmatpush1.bf16.msra.mxu0 0
        %443 = vmatprep.mubr.bf16.mxu0 0
        %444 = vmatmul.mubr.bf16.gmra.mrb[0].mxu0 %v339
        %v445 = vpop.f32.mrb[0].mxu0
        %v446 = vadd.f32 %v361, %v445
        %v447 = vpop.f32.mrb[0].mxu0
        %v448 = vpop.f32.mrb[0].mxu0
        %v449 = vpop.f32.mrb[0].mxu0
        %450 = vdwg.mxu0
        %v451 = vmax.f32 %v446, 0.0
        %v452 = vld [vmem:[%s4] sm:$0x1]
        %v453 = vld [vmem:[%s4 + $0x1] sm:$0x1]
        %v454 = vpack.c.bf16 %v451, %v451
        %v455 = vld [vmem:[#allocation7] sm:$0xf]
        %v456 = vld [vmem:[#allocation7 + $0x4] sm:$0xf]
        %v457 = vld [vmem:[#allocation7 + $0x8] sm:$0xf]
        %v458 = vld [vmem:[#allocation7 + $0xc] sm:$0xf]
        %v459 = vld [vmem:[#allocation7 + $0x10] sm:$0xf]
        %v460 = vld [vmem:[#allocation7 + $0x14] sm:$0xf]
        %v461 = vld [vmem:[#allocation7 + $0x18] sm:$0xf]
        %v462 = vld [vmem:[#allocation7 + $0x1c] sm:$0xf]
        %v463 = vld [vmem:[#allocation7 + $0x20] sm:$0xf]
        %v464 = vld [vmem:[#allocation7 + $0x24] sm:$0xf]
        %v465 = vld [vmem:[#allocation7 + $0x28] sm:$0xf]
        %v466 = vld [vmem:[#allocation7 + $0x2c] sm:$0xf]
        %v467 = vld [vmem:[#allocation7 + $0x30] sm:$0xf]
        %v468 = vld [vmem:[#allocation7 + $0x34] sm:$0xf]
        %v469 = vld [vmem:[#allocation7 + $0x38] sm:$0xf]
        %v470 = vld [vmem:[#allocation7 + $0x3c] sm:$0xf]
        %v472 = vlaneseq
        %v473 = vshrl.u32 %v472, 7
        %v474 = vsub.s32 0, %v473
        %v475 = vrot.slane %v452, %v474
        %v493 = vunpack.c.l.b16 %v455
        %v494 = vunpack.c.l.b16 %v456
        %v495 = vunpack.c.l.b16 %v457
        %v496 = vunpack.c.l.b16 %v458
        %v497 = vunpack.c.l.b16 %v459
        %v498 = vunpack.c.l.b16 %v460
        %v499 = vunpack.c.l.b16 %v461
        %v500 = vunpack.c.l.b16 %v462
        %v501 = vunpack.c.l.b16 %v463
        %v502 = vunpack.c.l.b16 %v464
        %v503 = vunpack.c.l.b16 %v465
        %v504 = vunpack.c.l.b16 %v466
        %v505 = vunpack.c.l.b16 %v467
        %v506 = vunpack.c.l.b16 %v468
        %v507 = vunpack.c.l.b16 %v469
        %v508 = vunpack.c.l.b16 %v470
        %v509 = vpack.c.b16 %v494, %v493
        %v510 = vpack.c.b16 %v496, %v495
        %v511 = vpack.c.b16 %v498, %v497
        %v512 = vpack.c.b16 %v500, %v499
        %v513 = vpack.c.b16 %v502, %v501
        %v514 = vpack.c.b16 %v504, %v503
        %v515 = vpack.c.b16 %v506, %v505
        %v516 = vpack.c.b16 %v508, %v507
        %525 = vmatprep.subr.bf16.mxu0 0
        %526 = vmatpush1.bf16.msra.mxu0 %v509
        %527 = vmatprep.subr.bf16.mxu0 0
        %528 = vmatpush1.bf16.msra.mxu0 %v510
        %529 = vmatprep.subr.bf16.mxu0 0
        %530 = vmatpush1.bf16.msra.mxu0 %v511
        %531 = vmatprep.subr.bf16.mxu0 0
        %532 = vmatpush1.bf16.msra.mxu0 %v512
        %533 = vmatprep.subr.bf16.mxu0 0
        %534 = vmatpush1.bf16.msra.mxu0 %v513
        %535 = vmatprep.subr.bf16.mxu0 0
        %536 = vmatpush1.bf16.msra.mxu0 %v514
        %537 = vmatprep.subr.bf16.mxu0 0
        %538 = vmatpush1.bf16.msra.mxu0 %v515
        %539 = vmatprep.subr.bf16.mxu0 0
        %540 = vmatpush1.bf16.msra.mxu0 %v516
        %541 = vmatprep.subr.bf16.mxu0 0
        %542 = vmatpush1.bf16.msra.mxu0 0
        %543 = vmatprep.subr.bf16.mxu0 0
        %544 = vmatpush1.bf16.msra.mxu0 0
        %545 = vmatprep.subr.bf16.mxu0 0
        %546 = vmatpush1.bf16.msra.mxu0 0
        %547 = vmatprep.subr.bf16.mxu0 0
        %548 = vmatpush1.bf16.msra.mxu0 0
        %549 = vmatprep.subr.bf16.mxu0 0
        %550 = vmatpush1.bf16.msra.mxu0 0
        %551 = vmatprep.subr.bf16.mxu0 0
        %552 = vmatpush1.bf16.msra.mxu0 0
        %553 = vmatprep.subr.bf16.mxu0 0
        %554 = vmatpush1.bf16.msra.mxu0 0
        %555 = vmatprep.subr.bf16.mxu0 0
        %556 = vmatpush1.bf16.msra.mxu0 0
        %557 = vmatprep.mubr.bf16.mxu0 0
        %558 = vmatmul.mubr.bf16.gmra.mrb[0].mxu0 %v454
        %v559 = vpop.f32.mrb[0].mxu0
        %v560 = vadd.f32 %v475, %v559
        %v561 = vpop.f32.mrb[0].mxu0
        %v562 = vpop.f32.mrb[0].mxu0
        %v563 = vpop.f32.mrb[0].mxu0
        %564 = vdwg.mxu0
        %v565 = vmax.f32 %v560, 0.0
        %v566 = vpack.c.bf16 %v565, %v565
        %s567 = scalar_lea.vmem [#allocation7], 64
        %v568 = vld [vmem:[%s567] sm:$0xf]
        %v569 = vld [vmem:[%s567 + $0x4] sm:$0xf]
        %v570 = vld [vmem:[%s567 + $0x8] sm:$0xf]
        %v571 = vld [vmem:[%s567 + $0xc] sm:$0xf]
        %v572 = vld [vmem:[%s567 + $0x10] sm:$0xf]
        %v573 = vld [vmem:[%s567 + $0x14] sm:$0xf]
        %v574 = vld [vmem:[%s567 + $0x18] sm:$0xf]
        %v575 = vld [vmem:[%s567 + $0x1c] sm:$0xf]
        %v576 = vld [vmem:[%s567 + $0x20] sm:$0xf]
        %v577 = vld [vmem:[%s567 + $0x24] sm:$0xf]
        %v578 = vld [vmem:[%s567 + $0x28] sm:$0xf]
        %v579 = vld [vmem:[%s567 + $0x2c] sm:$0xf]
        %v580 = vld [vmem:[%s567 + $0x30] sm:$0xf]
        %v581 = vld [vmem:[%s567 + $0x34] sm:$0xf]
        %v582 = vld [vmem:[%s567 + $0x38] sm:$0xf]
        %v583 = vld [vmem:[%s567 + $0x3c] sm:$0xf]
        %v585 = vlaneseq
        %v586 = vshrl.u32 %v585, 7
        %v587 = vsub.s32 0, %v586
        %v588 = vrot.slane %v453, %v587
        %v606 = vunpack.c.l.b16 %v568
        %v607 = vunpack.c.l.b16 %v569
        %v608 = vunpack.c.l.b16 %v570
        %v609 = vunpack.c.l.b16 %v571
        %v610 = vunpack.c.l.b16 %v572
        %v611 = vunpack.c.l.b16 %v573
        %v612 = vunpack.c.l.b16 %v574
        %v613 = vunpack.c.l.b16 %v575
        %v614 = vunpack.c.l.b16 %v576
        %v615 = vunpack.c.l.b16 %v577
        %v616 = vunpack.c.l.b16 %v578
        %v617 = vunpack.c.l.b16 %v579
        %v618 = vunpack.c.l.b16 %v580
        %v619 = vunpack.c.l.b16 %v581
        %v620 = vunpack.c.l.b16 %v582
        %v621 = vunpack.c.l.b16 %v583
        %v622 = vpack.c.b16 %v607, %v606
        %v623 = vpack.c.b16 %v609, %v608
        %v624 = vpack.c.b16 %v611, %v610
        %v625 = vpack.c.b16 %v613, %v612
        %v626 = vpack.c.b16 %v615, %v614
        %v627 = vpack.c.b16 %v617, %v616
        %v628 = vpack.c.b16 %v619, %v618
        %v629 = vpack.c.b16 %v621, %v620
        %638 = vmatprep.subr.bf16.mxu0 0
        %639 = vmatpush1.bf16.msra.mxu0 %v622
        %640 = vmatprep.subr.bf16.mxu0 0
        %641 = vmatpush1.bf16.msra.mxu0 %v623
        %642 = vmatprep.subr.bf16.mxu0 0
        %643 = vmatpush1.bf16.msra.mxu0 %v624
        %644 = vmatprep.subr.bf16.mxu0 0
        %645 = vmatpush1.bf16.msra.mxu0 %v625
        %646 = vmatprep.subr.bf16.mxu0 0
        %647 = vmatpush1.bf16.msra.mxu0 %v626
        %648 = vmatprep.subr.bf16.mxu0 0
        %649 = vmatpush1.bf16.msra.mxu0 %v627
        %650 = vmatprep.subr.bf16.mxu0 0
        %651 = vmatpush1.bf16.msra.mxu0 %v628
        %652 = vmatprep.subr.bf16.mxu0 0
        %653 = vmatpush1.bf16.msra.mxu0 %v629
        %654 = vmatprep.subr.bf16.mxu0 0
        %655 = vmatpush1.bf16.msra.mxu0 0
        %656 = vmatprep.subr.bf16.mxu0 0
        %657 = vmatpush1.bf16.msra.mxu0 0
        %658 = vmatprep.subr.bf16.mxu0 0
        %659 = vmatpush1.bf16.msra.mxu0 0
        %660 = vmatprep.subr.bf16.mxu0 0
        %661 = vmatpush1.bf16.msra.mxu0 0
        %662 = vmatprep.subr.bf16.mxu0 0
        %663 = vmatpush1.bf16.msra.mxu0 0
        %664 = vmatprep.subr.bf16.mxu0 0
        %665 = vmatpush1.bf16.msra.mxu0 0
        %666 = vmatprep.subr.bf16.mxu0 0
        %667 = vmatpush1.bf16.msra.mxu0 0
        %668 = vmatprep.subr.bf16.mxu0 0
        %669 = vmatpush1.bf16.msra.mxu0 0
        %670 = vmatprep.mubr.bf16.mxu0 0
        %671 = vmatmul.mubr.bf16.gmra.mrb[0].mxu0 %v566
        %v672 = vpop.f32.mrb[0].mxu0
        %v673 = vadd.f32 %v588, %v672
        %v674 = vpop.f32.mrb[0].mxu0
        %v675 = vpop.f32.mrb[0].mxu0
        %v676 = vpop.f32.mrb[0].mxu0
        %677 = vdwg.mxu0
        %v678 = vmax.f32 %v673, 0.0
        %v679 = vpack.c.bf16 %v678, %v678
        %v680 = vld [vmem:[#allocation8] sm:$0xf]
        %v681 = vld [vmem:[#allocation8 + $0x4] sm:$0xf]
        %v682 = vld [vmem:[#allocation8 + $0x8] sm:$0xf]
        %v683 = vld [vmem:[#allocation8 + $0xc] sm:$0xf]
        %v684 = vld [vmem:[#allocation8 + $0x10] sm:$0xf]
        %v685 = vld [vmem:[#allocation8 + $0x14] sm:$0xf]
        %v686 = vld [vmem:[#allocation8 + $0x18] sm:$0xf]
        %v687 = vld [vmem:[#allocation8 + $0x1c] sm:$0xf]
        %v688 = vld [vmem:[#allocation8 + $0x20] sm:$0xf]
        %v689 = vld [vmem:[#allocation8 + $0x24] sm:$0xf]
        %v690 = vld [vmem:[#allocation8 + $0x28] sm:$0xf]
        %v691 = vld [vmem:[#allocation8 + $0x2c] sm:$0xf]
        %v692 = vld [vmem:[#allocation8 + $0x30] sm:$0xf]
        %v693 = vld [vmem:[#allocation8 + $0x34] sm:$0xf]
        %v694 = vld [vmem:[#allocation8 + $0x38] sm:$0xf]
        %v695 = vld [vmem:[#allocation8 + $0x3c] sm:$0xf]
        %v696 = vld [vmem:[%s6] sm:$0x1]
        %v698 = vlaneseq
        %v699 = vshrl.u32 %v698, 7
        %v700 = vsub.s32 0, %v699
        %v701 = vrot.slane %v696, %v700
        %v719 = vunpack.c.l.b16 %v680
        %v720 = vunpack.c.l.b16 %v681
        %v721 = vunpack.c.l.b16 %v682
        %v722 = vunpack.c.l.b16 %v683
        %v723 = vunpack.c.l.b16 %v684
        %v724 = vunpack.c.l.b16 %v685
        %v725 = vunpack.c.l.b16 %v686
        %v726 = vunpack.c.l.b16 %v687
        %v727 = vunpack.c.l.b16 %v688
        %v728 = vunpack.c.l.b16 %v689
        %v729 = vunpack.c.l.b16 %v690
        %v730 = vunpack.c.l.b16 %v691
        %v731 = vunpack.c.l.b16 %v692
        %v732 = vunpack.c.l.b16 %v693
        %v733 = vunpack.c.l.b16 %v694
        %v734 = vunpack.c.l.b16 %v695
        %v735 = vpack.c.b16 %v720, %v719
        %v736 = vpack.c.b16 %v722, %v721
        %v737 = vpack.c.b16 %v724, %v723
        %v738 = vpack.c.b16 %v726, %v725
        %v739 = vpack.c.b16 %v728, %v727
        %v740 = vpack.c.b16 %v730, %v729
        %v741 = vpack.c.b16 %v732, %v731
        %v742 = vpack.c.b16 %v734, %v733
        %751 = vmatprep.subr.bf16.mxu0 0
        %752 = vmatpush1.bf16.msra.mxu0 %v735
        %753 = vmatprep.subr.bf16.mxu0 0
        %754 = vmatpush1.bf16.msra.mxu0 %v736
        %755 = vmatprep.subr.bf16.mxu0 0
        %756 = vmatpush1.bf16.msra.mxu0 %v737
        %757 = vmatprep.subr.bf16.mxu0 0
        %758 = vmatpush1.bf16.msra.mxu0 %v738
        %759 = vmatprep.subr.bf16.mxu0 0
        %760 = vmatpush1.bf16.msra.mxu0 %v739
        %761 = vmatprep.subr.bf16.mxu0 0
        %762 = vmatpush1.bf16.msra.mxu0 %v740
        %763 = vmatprep.subr.bf16.mxu0 0
        %764 = vmatpush1.bf16.msra.mxu0 %v741
        %765 = vmatprep.subr.bf16.mxu0 0
        %766 = vmatpush1.bf16.msra.mxu0 %v742
        %767 = vmatprep.subr.bf16.mxu0 0
        %768 = vmatpush1.bf16.msra.mxu0 0
        %769 = vmatprep.subr.bf16.mxu0 0
        %770 = vmatpush1.bf16.msra.mxu0 0
        %771 = vmatprep.subr.bf16.mxu0 0
        %772 = vmatpush1.bf16.msra.mxu0 0
        %773 = vmatprep.subr.bf16.mxu0 0
        %774 = vmatpush1.bf16.msra.mxu0 0
        %775 = vmatprep.subr.bf16.mxu0 0
        %776 = vmatpush1.bf16.msra.mxu0 0
        %777 = vmatprep.subr.bf16.mxu0 0
        %778 = vmatpush1.bf16.msra.mxu0 0
        %779 = vmatprep.subr.bf16.mxu0 0
        %780 = vmatpush1.bf16.msra.mxu0 0
        %781 = vmatprep.subr.bf16.mxu0 0
        %782 = vmatpush1.bf16.msra.mxu0 0
        %783 = vmatprep.mubr.bf16.mxu0 0
        %784 = vmatmul.mubr.bf16.gmra.mrb[0].mxu0 %v679
        %v785 = vpop.f32.mrb[0].mxu0
        %v786 = vadd.f32 %v701, %v785
        %v787 = vpop.f32.mrb[0].mxu0
        %v788 = vpop.f32.mrb[0].mxu0
        %v789 = vpop.f32.mrb[0].mxu0
        %790 = vdwg.mxu0
        %v791 = vmax.f32 %v786, 0.0
        %792 = vst [vmem:[%s337] sm:$0xff] %v791
        %s793 = sand.u32 %s186, 1
        %s794 = scalar_lea.sflag [#allocation4], %s793
        %s795 = sand.u32 %s186, 1
        %s796 = smul.addr %s795, 8
        %s797 = scalar_lea.vmem [#allocation10], %s796
        // Predicated region
        $region65: #{tpu_custom_call.1} parent=47 // pred_check
          %p798 = pneg %p196
        $region66: #{tpu_custom_call.1} parent=47 // pred_check_branch
          %800 = sbr.rel (%p798) target = $region68
        $region67: #{tpu_custom_call.1} parent=47 // pred_region
          %s802 = ssub.s32 128, 128
          %803 = vsyncadd %s794, %s802
          %s804 = smul.addr %s26, 128
          %s805 = scalar_lea.hbm %s7, %s804
          %s807 = sshll.u32 %s797, 4
          %s808 = int_to_ptr.vmem [resolvable:$true] %s807
          %810 = dma.vmem_to_hbm [thread:$0]  %s808, 128, %s805, %s794
        $region68: #{tpu_custom_call.1} parent=47 // pred_fallthru
          _
      $region48: #{tpu_custom_call.1} parent=5 // pred_fallthru
        _
      %p811 = scmp.le.s32.totalorder 2, %s21
      // Predicated region
      $region69: #{tpu_custom_call.1} parent=5 // pred_check
        %p812 = pneg %p811
      $region70: #{tpu_custom_call.1} parent=5 // pred_check_branch
        %814 = sbr.rel (%p812) target = $region72
      $region71: #{tpu_custom_call.1} parent=5 // pred_region
        %s815 = ssub.s32 %s21, 2
        // Predicated region
        $region73: #{tpu_custom_call.1} parent=71 // pred_check
          %p816 = pneg %p202
        $region74: #{tpu_custom_call.1} parent=71 // pred_check_branch
          %818 = sbr.rel (%p816) target = $region76
        $region75: #{tpu_custom_call.1} parent=71 // pred_region
          %s819 = sand.u32 %s187, 1
          %s820 = scalar_lea.sflag [#allocation4], %s819
          %s821 = sand.u32 %s187, 1
          %s822 = smul.addr %s821, 8
          %s823 = scalar_lea.vmem [#allocation10], %s822
          %824 = dma.done %s820, 128
        $region76: #{tpu_custom_call.1} parent=71 // pred_fallthru
          _
      $region72: #{tpu_custom_call.1} parent=5 // pred_fallthru
        _
    $region6: #{tpu_custom_call.1} parent=1 // loop_footer
      %s25 = sadd.s32 1, %s21
    $region7: #{tpu_custom_call.1} parent=1 // loop_footer_branch
      %20 = sbr.rel target = $region3
    $region8: #{tpu_custom_call.1} parent=1 // loop_exit
      _
    %825 = vsyncpa [#allocation3], 1
    %s826 = scalar_lea.sflag [#allocation3], 1
    %827 = vsyncpa %s826, 1
    %828 = vsyncpa [#allocation6], 1
    %829 = vsyncpa [#allocation9], 1
    %830 = vsyncpa [#allocation4], 1
    %s831 = scalar_lea.sflag [#allocation4], 1
    %832 = vsyncpa %s831, 1

// kernel: tpu_custom_call.1
$region0: #{tpu_custom_call.1}
  #allocation0 [shape = 'u32[]', space=smem, size = 0x4, offset = 0x4, fixed_abs, tag = 'smem constant byte address 0x4 - core index']
  #allocation1 [shape = 'u32[144,128]{1,0:T(1,128)}', space=vmem, size = 0x12000, scoped, tag = 'internal scratch']
  %s0 = inlined_call_operand.hbm [shape: bf16[16,128], index: 0, kind: input, shape index: {}]
  %s1 = inlined_call_operand.hbm [shape: bf16[128,128], index: 1, kind: input, shape index: {}]
  %s2 = inlined_call_operand.vmem [shape: f32[1,128], index: 2, kind: input, shape index: {}]
  %s3 = inlined_call_operand.hbm [shape: bf16[2,128,128], index: 3, kind: input, shape index: {}]
  %s4 = inlined_call_operand.vmem [shape: f32[2,1,128], index: 4, kind: input, shape index: {}]
  %s5 = inlined_call_operand.hbm [shape: bf16[128,128], index: 5, kind: input, shape index: {}]
  %s6 = inlined_call_operand.vmem [shape: f32[1,128], index: 6, kind: input, shape index: {}]
  %s7 = inlined_call_operand.hbm [shape: f32[16,128], index: 7, kind: output, shape index: {}]
  %s8 = sld [smem:[#allocation0]]
  $region77: #{tpu_custom_call.1} parent=0
    _
  %s10 = ssub.s32 1, %s8
  %s11 = scalar_select 0, %s10, %s8
  $region1: #{tpu_custom_call.1} parent=0
    #allocation2 [shape = 'u8[4096]{0}', space=vmem, size = 0x1000, scoped, tag = 'input window, operand 0']
    #allocation3 [shape = 's32[2]{0}', space=sflag, size = 0x8, scoped, tag = 'scoped memory for tpu_custom_call.1']
    #allocation4 [shape = 's32[2]{0}', space=sflag, size = 0x8, scoped, tag = 'scoped memory for tpu_custom_call.1']
    #allocation5 [shape = 'u8[32768]{0}', space=vmem, size = 0x8000, scoped, tag = 'input window, operand 1, single buffered']
    #allocation6 [shape = 's32[1]{0}', space=sflag, size = 0x4, scoped, tag = 'scoped memory for tpu_custom_call.1']
    #allocation7 [shape = 'u8[65536]{0}', space=vmem, size = 0x10000, scoped, tag = 'input window, operand 3, single buffered']
    #allocation8 [shape = 'u8[32768]{0}', space=vmem, size = 0x8000, scoped, tag = 'input window, operand 5, single buffered']
    #allocation9 [shape = 's32[1]{0}', space=sflag, size = 0x4, scoped, tag = 'scoped memory for tpu_custom_call.1']
    #allocation10 [shape = 'u8[8192]{0}', space=vmem, size = 0x2000, scoped, tag = 'output window, operand 0']
    %12 = vsyncpa [#allocation3], 0
    %s13 = scalar_lea.sflag [#allocation3], 1
    %14 = vsyncpa %s13, 0
    %15 = vsyncpa [#allocation6], 0
    %16 = vsyncpa [#allocation9], 0
    %17 = vsyncpa [#allocation4], 0
    %s18 = scalar_lea.sflag [#allocation4], 1
    %19 = vsyncpa %s18, 0
    loop: start=0, step=1, limit=4
    $region2: #{tpu_custom_call.1} parent=1 // loop_pre_header
      _
    $region3: #{tpu_custom_call.1} parent=1 // loop_header
      %s21 = sphi 0, %s25
      %p22 = scmp.ge.s32.totalorder %s21, 4
      %s31 = sphi 0, %s33
      %s34 = sphi 0, %s31
      %s35 = sphi 0, %s34
      %s51 = sphi 0, %s35
      %s55 = sphi 0, %s55
      %s57 = sphi 0, %s55
      %s58 = sphi 0, %s57
      %s72 = sphi 0, %s58
      %s76 = sphi 0, %s76
      %s78 = sphi 0, %s76
      %s79 = sphi 0, %s78
      %s93 = sphi 0, %s79
      %s97 = sphi 0, %s97
      %s99 = sphi 0, %s97
      %s100 = sphi 0, %s99
      %s114 = sphi 0, %s100
      %s118 = sphi 0, %s118
      %s120 = sphi 0, %s118
      %s121 = sphi 0, %s120
      %s135 = sphi 0, %s121
      %s139 = sphi 0, %s139
      %s141 = sphi 0, %s139
      %s142 = sphi 0, %s141
      %s156 = sphi 0, %s142
      %s160 = sphi 0, %s160
      %s162 = sphi 0, %s160
      %s163 = sphi 0, %s162
      %s177 = sphi 0, %s163
      %s183 = sphi 0, %s185
      %s186 = sphi 0, %s183
      %s187 = sphi 0, %s186
      %s203 = sphi 0, %s187
    $region4: #{tpu_custom_call.1} parent=1 // loop_header_branch
      %24 = sbr.rel (%p22) target = $region8
    $region5: #{tpu_custom_call.1} parent=1 // loop_body
      %s26 = ssub.s32 %s21, 1
      %s27 = ssub.s32 %s21, 2
      %s28 = sadd.s32 %s21, 1
      %s29 = ssub.s32 %s21, %s28
      %p30 = scmp.eq.s32.totalorder %s29, 0
      %s32 = sadd.s32 %s31, 1
      %s33 = scalar_select %p30, %s31, %s32
      %p36 = pneg %p30
      %p37 = scmp.eq.s32.totalorder %s21, 1
      %p38 = por %p36, %p37
      %p39 = scmp.ne.s32.totalorder %s31, %s34
      %p40 = scmp.eq.s32.totalorder %s21, 0
      %p41 = por %p39, %p40
      %p42 = scmp.ne.s32.totalorder %s31, %s34
      %p43 = scmp.eq.s32.totalorder %s26, 1
      %p44 = por %p42, %p43
      %p45 = scmp.ne.s32.totalorder %s34, %s35
      %p46 = scmp.eq.s32.totalorder %s26, 0
      %p47 = por %p45, %p46
      %p48 = scmp.ne.s32.totalorder %s34, %s35
      %p49 = scmp.eq.s32.totalorder %s27, 1
      %p50 = por %p48, %p49
      %p52 = scmp.ne.s32.totalorder %s35, %s51
      %p53 = scmp.eq.s32.totalorder %s27, 0
      %p54 = por %p52, %p53
      %s56 = sadd.s32 %s55, 1
      %p59 = scmp.eq.s32.totalorder %s21, 1
      %p60 = scmp.ne.s32.totalorder %s55, %s57
      %p61 = scmp.eq.s32.totalorder %s21, 0
      %p62 = por %p60, %p61
      %p63 = scmp.ne.s32.totalorder %s55, %s57
      %p64 = scmp.eq.s32.totalorder %s26, 1
      %p65 = por %p63, %p64
      %p66 = scmp.ne.s32.totalorder %s57, %s58
      %p67 = scmp.eq.s32.totalorder %s26, 0
      %p68 = por %p66, %p67
      %p69 = scmp.ne.s32.totalorder %s57, %s58
      %p70 = scmp.eq.s32.totalorder %s27, 1
      %p71 = por %p69, %p70
      %p73 = scmp.ne.s32.totalorder %s58, %s72
      %p74 = scmp.eq.s32.totalorder %s27, 0
      %p75 = por %p73, %p74
      %s77 = sadd.s32 %s76, 1
      %p80 = scmp.eq.s32.totalorder %s21, 1
      %p81 = scmp.ne.s32.totalorder %s76, %s78
      %p82 = scmp.eq.s32.totalorder %s21, 0
      %p83 = por %p81, %p82
      %p84 = scmp.ne.s32.totalorder %s76, %s78
      %p85 = scmp.eq.s32.totalorder %s26, 1
      %p86 = por %p84, %p85
      %p87 = scmp.ne.s32.totalorder %s78, %s79
      %p88 = scmp.eq.s32.totalorder %s26, 0
      %p89 = por %p87, %p88
      %p90 = scmp.ne.s32.totalorder %s78, %s79
      %p91 = scmp.eq.s32.totalorder %s27, 1
      %p92 = por %p90, %p91
      %p94 = scmp.ne.s32.totalorder %s79, %s93
      %p95 = scmp.eq.s32.totalorder %s27, 0
      %p96 = por %p94, %p95
      %s98 = sadd.s32 %s97, 1
      %p101 = scmp.eq.s32.totalorder %s21, 1
      %p102 = scmp.ne.s32.totalorder %s97, %s99
      %p103 = scmp.eq.s32.totalorder %s21, 0
      %p104 = por %p102, %p103
      %p105 = scmp.ne.s32.totalorder %s97, %s99
      %p106 = scmp.eq.s32.totalorder %s26, 1
      %p107 = por %p105, %p106
      %p108 = scmp.ne.s32.totalorder %s99, %s100
      %p109 = scmp.eq.s32.totalorder %s26, 0
      %p110 = por %p108, %p109
      %p111 = scmp.ne.s32.totalorder %s99, %s100
      %p112 = scmp.eq.s32.totalorder %s27, 1
      %p113 = por %p111, %p112
      %p115 = scmp.ne.s32.totalorder %s100, %s114
      %p116 = scmp.eq.s32.totalorder %s27, 0
      %p117 = por %p115, %p116
      %s119 = sadd.s32 %s118, 1
      %p122 = scmp.eq.s32.totalorder %s21, 1
      %p123 = scmp.ne.s32.totalorder %s118, %s120
      %p124 = scmp.eq.s32.totalorder %s21, 0
      %p125 = por %p123, %p124
      %p126 = scmp.ne.s32.totalorder %s118, %s120
      %p127 = scmp.eq.s32.totalorder %s26, 1
      %p128 = por %p126, %p127
      %p129 = scmp.ne.s32.totalorder %s120, %s121
      %p130 = scmp.eq.s32.totalorder %s26, 0
      %p131 = por %p129, %p130
      %p132 = scmp.ne.s32.totalorder %s120, %s121
      %p133 = scmp.eq.s32.totalorder %s27, 1
      %p134 = por %p132, %p133
      %p136 = scmp.ne.s32.totalorder %s121, %s135
      %p137 = scmp.eq.s32.totalorder %s27, 0
      %p138 = por %p136, %p137
      %s140 = sadd.s32 %s139, 1
      %p143 = scmp.eq.s32.totalorder %s21, 1
      %p144 = scmp.ne.s32.totalorder %s139, %s141
      %p145 = scmp.eq.s32.totalorder %s21, 0
      %p146 = por %p144, %p145
      %p147 = scmp.ne.s32.totalorder %s139, %s141
      %p148 = scmp.eq.s32.totalorder %s26, 1
      %p149 = por %p147, %p148
      %p150 = scmp.ne.s32.totalorder %s141, %s142
      %p151 = scmp.eq.s32.totalorder %s26, 0
      %p152 = por %p150, %p151
      %p153 = scmp.ne.s32.totalorder %s141, %s142
      %p154 = scmp.eq.s32.totalorder %s27, 1
      %p155 = por %p153, %p154
      %p157 = scmp.ne.s32.totalorder %s142, %s156
      %p158 = scmp.eq.s32.totalorder %s27, 0
      %p159 = por %p157, %p158
      %s161 = sadd.s32 %s160, 1
      %p164 = scmp.eq.s32.totalorder %s21, 1
      %p165 = scmp.ne.s32.totalorder %s160, %s162
      %p166 = scmp.eq.s32.totalorder %s21, 0
      %p167 = por %p165, %p166
      %p168 = scmp.ne.s32.totalorder %s160, %s162
      %p169 = scmp.eq.s32.totalorder %s26, 1
      %p170 = por %p168, %p169
      %p171 = scmp.ne.s32.totalorder %s162, %s163
      %p172 = scmp.eq.s32.totalorder %s26, 0
      %p173 = por %p171, %p172
      %p174 = scmp.ne.s32.totalorder %s162, %s163
      %p175 = scmp.eq.s32.totalorder %s27, 1
      %p176 = por %p174, %p175
      %p178 = scmp.ne.s32.totalorder %s163, %s177
      %p179 = scmp.eq.s32.totalorder %s27, 0
      %p180 = por %p178, %p179
      %s181 = ssub.s32 %s21, %s28
      %p182 = scmp.eq.s32.totalorder %s181, 0
      %s184 = sadd.s32 %s183, 1
      %s185 = scalar_select %p182, %s183, %s184
      %p188 = pneg %p182
      %p189 = scmp.eq.s32.totalorder %s21, 1
      %p190 = por %p188, %p189
      %p191 = scmp.ne.s32.totalorder %s183, %s186
      %p192 = scmp.eq.s32.totalorder %s21, 0
      %p193 = por %p191, %p192
      %p194 = scmp.ne.s32.totalorder %s183, %s186
      %p195 = scmp.eq.s32.totalorder %s26, 1
      %p196 = por %p194, %p195
      %p197 = scmp.ne.s32.totalorder %s186, %s187
      %p198 = scmp.eq.s32.totalorder %s26, 0
      %p199 = por %p197, %p198
      %p200 = scmp.ne.s32.totalorder %s186, %s187
      %p201 = scmp.eq.s32.totalorder %s27, 1
      %p202 = por %p200, %p201
      %p204 = scmp.ne.s32.totalorder %s187, %s203
      %p205 = scmp.eq.s32.totalorder %s27, 0
      %p206 = por %p204, %p205
      %p207 = scmp.le.s32.totalorder 1, %s21
      %p208 = scmp.lt.s32.totalorder %s21, 3
      %p209 = pnand %p207, %p208
      %p210 = pneg %p209
      // Predicated region
      $region9: #{tpu_custom_call.1} parent=5 // pred_check
        _
      $region10: #{tpu_custom_call.1} parent=5 // pred_check_branch
        %212 = sbr.rel (%p209) target = $region12
      $region11: #{tpu_custom_call.1} parent=5 // pred_region
        %s213 = ssub.s32 %s21, 1
        // Predicated region
        $region13: #{tpu_custom_call.1} parent=11 // pred_check
          %p214 = pneg %p68
        $region14: #{tpu_custom_call.1} parent=11 // pred_check_branch
          %216 = sbr.rel (%p214) target = $region16
        $region15: #{tpu_custom_call.1} parent=11 // pred_region
          %s218 = ssub.s32 1024, 1024
          %219 = vsyncadd [#allocation6], %s218
          %s220 = sshll.u32 [#allocation5], 4
          %s221 = int_to_ptr.vmem [resolvable:$true] %s220
          %226 = dma.hbm_to_vmem [thread:$0]  %s1, 1024, %s221, [#allocation6], 64, 64, 4
        $region16: #{tpu_custom_call.1} parent=11 // pred_fallthru
          _
        // Predicated region
        $region17: #{tpu_custom_call.1} parent=11 // pred_check
          %p227 = pneg %p89
        $region18: #{tpu_custom_call.1} parent=11 // pred_check_branch
          %229 = sbr.rel (%p227) target = $region20
        $region19: #{tpu_custom_call.1} parent=11 // pred_region
          _
        $region20: #{tpu_custom_call.1} parent=11 // pred_fallthru
          _
        // Predicated region
        $region21: #{tpu_custom_call.1} parent=11 // pred_check
          %p230 = pneg %p110
        $region22: #{tpu_custom_call.1} parent=11 // pred_check_branch
          %232 = sbr.rel (%p230) target = $region24
        $region23: #{tpu_custom_call.1} parent=11 // pred_region
          %s234 = ssub.s32 2048, 2048
          %235 = vsyncadd [#allocation6], %s234
          %s236 = sshll.u32 [#allocation7], 4
          %s237 = int_to_ptr.vmem [resolvable:$true] %s236
          %242 = dma.hbm_to_vmem [thread:$0]  %s3, 2048, %s237, [#allocation6], 64, 64, 4
        $region24: #{tpu_custom_call.1} parent=11 // pred_fallthru
          _
        // Predicated region
        $region25: #{tpu_custom_call.1} parent=11 // pred_check
          %p243 = pneg %p131
        $region26: #{tpu_custom_call.1} parent=11 // pred_check_branch
          %245 = sbr.rel (%p243) target = $region28
        $region27: #{tpu_custom_call.1} parent=11 // pred_region
          _
        $region28: #{tpu_custom_call.1} parent=11 // pred_fallthru
          _
        // Predicated region
        $region29: #{tpu_custom_call.1} parent=11 // pred_check
          %p246 = pneg %p152
        $region30: #{tpu_custom_call.1} parent=11 // pred_check_branch
          %248 = sbr.rel (%p246) target = $region32
        $region31: #{tpu_custom_call.1} parent=11 // pred_region
          %s250 = ssub.s32 1024, 1024
          %251 = vsyncadd [#allocation9], %s250
          %s252 = sshll.u32 [#allocation8], 4
          %s253 = int_to_ptr.vmem [resolvable:$true] %s252
          %258 = dma.hbm_to_vmem [thread:$0]  %s5, 1024, %s253, [#allocation9], 64, 64, 4
        $region32: #{tpu_custom_call.1} parent=11 // pred_fallthru
          _
        // Predicated region
        $region33: #{tpu_custom_call.1} parent=11 // pred_check
          %p259 = pneg %p173
        $region34: #{tpu_custom_call.1} parent=11 // pred_check_branch
          %261 = sbr.rel (%p259) target = $region36
        $region35: #{tpu_custom_call.1} parent=11 // pred_region
          _
        $region36: #{tpu_custom_call.1} parent=11 // pred_fallthru
          _
      $region12: #{tpu_custom_call.1} parent=5 // pred_fallthru
        _
      %p262 = scmp.lt.s32.totalorder %s21, 2
      // Predicated region
      $region37: #{tpu_custom_call.1} parent=5 // pred_check
        %p263 = pneg %p262
      $region38: #{tpu_custom_call.1} parent=5 // pred_check_branch
        %265 = sbr.rel (%p263) target = $region40
      $region39: #{tpu_custom_call.1} parent=5 // pred_region
        // Predicated region
        $region41: #{tpu_custom_call.1} parent=39 // pred_check
          %p266 = pneg %p41
        $region42: #{tpu_custom_call.1} parent=39 // pred_check_branch
          %268 = sbr.rel (%p266) target = $region44
        $region43: #{tpu_custom_call.1} parent=39 // pred_region
          %s269 = sand.u32 %s31, 1
          %s270 = scalar_lea.sflag [#allocation3], %s269
          %s271 = sand.u32 %s31, 1
          %s272 = smul.addr %s271, 4
          %s273 = scalar_lea.vmem [#allocation2], %s272
          %s275 = ssub.s32 64, 64
          %276 = vsyncadd %s270, %s275
          %s277 = smul.addr %s21, 64
          %s278 = scalar_lea.hbm %s0, %s277
          %s280 = sshll.u32 %s273, 4
          %s281 = int_to_ptr.vmem [resolvable:$true] %s280
          %283 = dma.hbm_to_vmem [thread:$0]  %s278, 64, %s281, %s270
        $region44: #{tpu_custom_call.1} parent=39 // pred_fallthru
          _
      $region40: #{tpu_custom_call.1} parent=5 // pred_fallthru
        _
      %p284 = scmp.le.s32.totalorder 1, %s21
      %p285 = scmp.lt.s32.totalorder %s21, 3
      %p286 = pnand %p284, %p285
      %p287 = pneg %p286
      // Predicated region
      $region45: #{tpu_custom_call.1} parent=5 // pred_check
        _
      $region46: #{tpu_custom_call.1} parent=5 // pred_check_branch
        %289 = sbr.rel (%p286) target = $region48
      $region47: #{tpu_custom_call.1} parent=5 // pred_region
        %s290 = ssub.s32 %s21, 1
        %s291 = sand.u32 %s34, 1
        %s292 = scalar_lea.sflag [#allocation3], %s291
        %s293 = sand.u32 %s34, 1
        %s294 = smul.addr %s293, 4
        %s295 = scalar_lea.vmem [#allocation2], %s294
        // Predicated region
        $region49: #{tpu_custom_call.1} parent=47 // pred_check
          %p296 = pneg %p47
        $region50: #{tpu_custom_call.1} parent=47 // pred_check_branch
          %298 = sbr.rel (%p296) target = $region52
        $region51: #{tpu_custom_call.1} parent=47 // pred_region
          %299 = dma.done %s292, 64
        $region52: #{tpu_custom_call.1} parent=47 // pred_fallthru
          _
        // Predicated region
        $region53: #{tpu_custom_call.1} parent=47 // pred_check
          %p300 = pneg %p68
        $region54: #{tpu_custom_call.1} parent=47 // pred_check_branch
          %302 = sbr.rel (%p300) target = $region56
        $region55: #{tpu_custom_call.1} parent=47 // pred_region
          %303 = dma.done [#allocation6], 1024
        $region56: #{tpu_custom_call.1} parent=47 // pred_fallthru
          _
        // Predicated region
        $region57: #{tpu_custom_call.1} parent=47 // pred_check
          %p304 = pneg %p110
        $region58: #{tpu_custom_call.1} parent=47 // pred_check_branch
          %306 = sbr.rel (%p304) target = $region60
        $region59: #{tpu_custom_call.1} parent=47 // pred_region
          %307 = dma.done [#allocation6], 2048
        $region60: #{tpu_custom_call.1} parent=47 // pred_fallthru
          _
        // Predicated region
        $region61: #{tpu_custom_call.1} parent=47 // pred_check
          %p308 = pneg %p152
        $region62: #{tpu_custom_call.1} parent=47 // pred_check_branch
          %310 = sbr.rel (%p308) target = $region64
        $region63: #{tpu_custom_call.1} parent=47 // pred_region
          %311 = dma.done [#allocation9], 1024
        $region64: #{tpu_custom_call.1} parent=47 // pred_fallthru
          _
        %s312 = sand.u32 %s34, 1
        %s313 = scalar_lea.sflag [#allocation3], %s312
        %s314 = sand.u32 %s34, 1
        %s315 = smul.addr %s314, 4
        %s316 = scalar_lea.vmem [#allocation2], %s315
        %p317 = pneg %p47
        %p318 = pneg %p44
        %p319 = pneg %p68
        %p320 = pneg %p65
        %p321 = pneg %p89
        %p322 = pneg %p86
        %p323 = pneg %p110
        %p324 = pneg %p107
        %p325 = pneg %p131
        %p326 = pneg %p128
        %p327 = pneg %p152
        %p328 = pneg %p149
        %p329 = pneg %p173
        %p330 = pneg %p170
        %p331 = pneg %p199
        %p332 = pneg %p196
        %s333 = sand.u32 %s186, 1
        %s334 = scalar_lea.sflag [#allocation4], %s333
        %s335 = sand.u32 %s186, 1
        %s336 = smul.addr %s335, 8
        %s337 = scalar_lea.vmem [#allocation10], %s336
        %v339 = vld [vmem:[%s295] sm:$0xf]
        %v340 = vld [vmem:[#allocation5] sm:$0xf]
        %v341 = vld [vmem:[#allocation5 + $0x4] sm:$0xf]
        %v342 = vld [vmem:[#allocation5 + $0x8] sm:$0xf]
        %v343 = vld [vmem:[#allocation5 + $0xc] sm:$0xf]
        %v344 = vld [vmem:[#allocation5 + $0x10] sm:$0xf]
        %v345 = vld [vmem:[#allocation5 + $0x14] sm:$0xf]
        %v346 = vld [vmem:[#allocation5 + $0x18] sm:$0xf]
        %v347 = vld [vmem:[#allocation5 + $0x1c] sm:$0xf]
        %v348 = vld [vmem:[#allocation5 + $0x20] sm:$0xf]
        %v349 = vld [vmem:[#allocation5 + $0x24] sm:$0xf]
        %v350 = vld [vmem:[#allocation5 + $0x28] sm:$0xf]
        %v351 = vld [vmem:[#allocation5 + $0x2c] sm:$0xf]
        %v352 = vld [vmem:[#allocation5 + $0x30] sm:$0xf]
        %v353 = vld [vmem:[#allocation5 + $0x34] sm:$0xf]
        %v354 = vld [vmem:[#allocation5 + $0x38] sm:$0xf]
        %v355 = vld [vmem:[#allocation5 + $0x3c] sm:$0xf]
        %v356 = vld [vmem:[%s2] sm:$0x1]
        %v358 = vlaneseq
        %v359 = vshrl.u32 %v358, 7
        %v360 = vsub.s32 0, %v359
        %v361 = vrot.slane %v356, %v360
        %v379 = vunpack.c.l.b16 %v340
        %v380 = vunpack.c.l.b16 %v341
        %v381 = vunpack.c.l.b16 %v342
        %v382 = vunpack.c.l.b16 %v343
        %v383 = vunpack.c.l.b16 %v344
        %v384 = vunpack.c.l.b16 %v345
        %v385 = vunpack.c.l.b16 %v346
        %v386 = vunpack.c.l.b16 %v347
        %v387 = vunpack.c.l.b16 %v348
        %v388 = vunpack.c.l.b16 %v349
        %v389 = vunpack.c.l.b16 %v350
        %v390 = vunpack.c.l.b16 %v351
        %v391 = vunpack.c.l.b16 %v352
        %v392 = vunpack.c.l.b16 %v353
        %v393 = vunpack.c.l.b16 %v354
        %v394 = vunpack.c.l.b16 %v355
        %v395 = vpack.c.b16 %v380, %v379
        %v396 = vpack.c.b16 %v382, %v381
        %v397 = vpack.c.b16 %v384, %v383
        %v398 = vpack.c.b16 %v386, %v385
        %v399 = vpack.c.b16 %v388, %v387
        %v400 = vpack.c.b16 %v390, %v389
        %v401 = vpack.c.b16 %v392, %v391
        %v402 = vpack.c.b16 %v394, %v393
        %411 = vmatprep.subr.bf16.mxu0 0
        %412 = vmatpush1.bf16.msra.mxu0 %v395
        %413 = vmatprep.subr.bf16.mxu0 0
        %414 = vmatpush1.bf16.msra.mxu0 %v396
        %415 = vmatprep.subr.bf16.mxu0 0
        %416 = vmatpush1.bf16.msra.mxu0 %v397
        %417 = vmatprep.subr.bf16.mxu0 0
        %418 = vmatpush1.bf16.msra.mxu0 %v398
        %419 = vmatprep.subr.bf16.mxu0 0
        %420 = vmatpush1.bf16.msra.mxu0 %v399
        %421 = vmatprep.subr.bf16.mxu0 0
        %422 = vmatpush1.bf16.msra.mxu0 %v400
        %423 = vmatprep.subr.bf16.mxu0 0
        %424 = vmatpush1.bf16.msra.mxu0 %v401
        %425 = vmatprep.subr.bf16.mxu0 0
        %426 = vmatpush1.bf16.msra.mxu0 %v402
        %427 = vmatprep.subr.bf16.mxu0 0
        %428 = vmatpush1.bf16.msra.mxu0 0
        %429 = vmatprep.subr.bf16.mxu0 0
        %430 = vmatpush1.bf16.msra.mxu0 0
        %431 = vmatprep.subr.bf16.mxu0 0
        %432 = vmatpush1.bf16.msra.mxu0 0
        %433 = vmatprep.subr.bf16.mxu0 0
        %434 = vmatpush1.bf16.msra.mxu0 0
        %435 = vmatprep.subr.bf16.mxu0 0
        %436 = vmatpush1.bf16.msra.mxu0 0
        %437 = vmatprep.subr.bf16.mxu0 0
        %438 = vmatpush1.bf16.msra.mxu0 0
        %439 = vmatprep.subr.bf16.mxu0 0
        %440 = vmatpush1.bf16.msra.mxu0 0
        %441 = vmatprep.subr.bf16.mxu0 0
        %442 = vmatpush1.bf16.msra.mxu0 0
        %443 = vmatprep.mubr.bf16.mxu0 0
        %444 = vmatmul.mubr.bf16.gmra.mrb[0].mxu0 %v339
        %v445 = vpop.f32.mrb[0].mxu0
        %v446 = vadd.f32 %v361, %v445
        %v447 = vpop.f32.mrb[0].mxu0
        %v448 = vpop.f32.mrb[0].mxu0
        %v449 = vpop.f32.mrb[0].mxu0
        %450 = vdwg.mxu0
        %v451 = vmax.f32 %v446, 0.0
        %v452 = vld [vmem:[%s4] sm:$0x1]
        %v453 = vld [vmem:[%s4 + $0x1] sm:$0x1]
        %v454 = vpack.c.bf16 %v451, %v451
        %v455 = vld [vmem:[#allocation7] sm:$0xf]
        %v456 = vld [vmem:[#allocation7 + $0x4] sm:$0xf]
        %v457 = vld [vmem:[#allocation7 + $0x8] sm:$0xf]
        %v458 = vld [vmem:[#allocation7 + $0xc] sm:$0xf]
        %v459 = vld [vmem:[#allocation7 + $0x10] sm:$0xf]
        %v460 = vld [vmem:[#allocation7 + $0x14] sm:$0xf]
        %v461 = vld [vmem:[#allocation7 + $0x18] sm:$0xf]
        %v462 = vld [vmem:[#allocation7 + $0x1c] sm:$0xf]
        %v463 = vld [vmem:[#allocation7 + $0x20] sm:$0xf]
        %v464 = vld [vmem:[#allocation7 + $0x24] sm:$0xf]
        %v465 = vld [vmem:[#allocation7 + $0x28] sm:$0xf]
        %v466 = vld [vmem:[#allocation7 + $0x2c] sm:$0xf]
        %v467 = vld [vmem:[#allocation7 + $0x30] sm:$0xf]
        %v468 = vld [vmem:[#allocation7 + $0x34] sm:$0xf]
        %v469 = vld [vmem:[#allocation7 + $0x38] sm:$0xf]
        %v470 = vld [vmem:[#allocation7 + $0x3c] sm:$0xf]
        %v472 = vlaneseq
        %v473 = vshrl.u32 %v472, 7
        %v474 = vsub.s32 0, %v473
        %v475 = vrot.slane %v452, %v474
        %v493 = vunpack.c.l.b16 %v455
        %v494 = vunpack.c.l.b16 %v456
        %v495 = vunpack.c.l.b16 %v457
        %v496 = vunpack.c.l.b16 %v458
        %v497 = vunpack.c.l.b16 %v459
        %v498 = vunpack.c.l.b16 %v460
        %v499 = vunpack.c.l.b16 %v461
        %v500 = vunpack.c.l.b16 %v462
        %v501 = vunpack.c.l.b16 %v463
        %v502 = vunpack.c.l.b16 %v464
        %v503 = vunpack.c.l.b16 %v465
        %v504 = vunpack.c.l.b16 %v466
        %v505 = vunpack.c.l.b16 %v467
        %v506 = vunpack.c.l.b16 %v468
        %v507 = vunpack.c.l.b16 %v469
        %v508 = vunpack.c.l.b16 %v470
        %v509 = vpack.c.b16 %v494, %v493
        %v510 = vpack.c.b16 %v496, %v495
        %v511 = vpack.c.b16 %v498, %v497
        %v512 = vpack.c.b16 %v500, %v499
        %v513 = vpack.c.b16 %v502, %v501
        %v514 = vpack.c.b16 %v504, %v503
        %v515 = vpack.c.b16 %v506, %v505
        %v516 = vpack.c.b16 %v508, %v507
        %525 = vmatprep.subr.bf16.mxu0 0
        %526 = vmatpush1.bf16.msra.mxu0 %v509
        %527 = vmatprep.subr.bf16.mxu0 0
        %528 = vmatpush1.bf16.msra.mxu0 %v510
        %529 = vmatprep.subr.bf16.mxu0 0
        %530 = vmatpush1.bf16.msra.mxu0 %v511
        %531 = vmatprep.subr.bf16.mxu0 0
        %532 = vmatpush1.bf16.msra.mxu0 %v512
        %533 = vmatprep.subr.bf16.mxu0 0
        %534 = vmatpush1.bf16.msra.mxu0 %v513
        %535 = vmatprep.subr.bf16.mxu0 0
        %536 = vmatpush1.bf16.msra.mxu0 %v514
        %537 = vmatprep.subr.bf16.mxu0 0
        %538 = vmatpush1.bf16.msra.mxu0 %v515
        %539 = vmatprep.subr.bf16.mxu0 0
        %540 = vmatpush1.bf16.msra.mxu0 %v516
        %541 = vmatprep.subr.bf16.mxu0 0
        %542 = vmatpush1.bf16.msra.mxu0 0
        %543 = vmatprep.subr.bf16.mxu0 0
        %544 = vmatpush1.bf16.msra.mxu0 0
        %545 = vmatprep.subr.bf16.mxu0 0
        %546 = vmatpush1.bf16.msra.mxu0 0
        %547 = vmatprep.subr.bf16.mxu0 0
        %548 = vmatpush1.bf16.msra.mxu0 0
        %549 = vmatprep.subr.bf16.mxu0 0
        %550 = vmatpush1.bf16.msra.mxu0 0
        %551 = vmatprep.subr.bf16.mxu0 0
        %552 = vmatpush1.bf16.msra.mxu0 0
        %553 = vmatprep.subr.bf16.mxu0 0
        %554 = vmatpush1.bf16.msra.mxu0 0
        %555 = vmatprep.subr.bf16.mxu0 0
        %556 = vmatpush1.bf16.msra.mxu0 0
        %557 = vmatprep.mubr.bf16.mxu0 0
        %558 = vmatmul.mubr.bf16.gmra.mrb[0].mxu0 %v454
        %v559 = vpop.f32.mrb[0].mxu0
        %v560 = vadd.f32 %v475, %v559
        %v561 = vpop.f32.mrb[0].mxu0
        %v562 = vpop.f32.mrb[0].mxu0
        %v563 = vpop.f32.mrb[0].mxu0
        %564 = vdwg.mxu0
        %v565 = vmax.f32 %v560, 0.0
        %v566 = vpack.c.bf16 %v565, %v565
        %s567 = scalar_lea.vmem [#allocation7], 64
        %v568 = vld [vmem:[%s567] sm:$0xf]
        %v569 = vld [vmem:[%s567 + $0x4] sm:$0xf]
        %v570 = vld [vmem:[%s567 + $0x8] sm:$0xf]
        %v571 = vld [vmem:[%s567 + $0xc] sm:$0xf]
        %v572 = vld [vmem:[%s567 + $0x10] sm:$0xf]
        %v573 = vld [vmem:[%s567 + $0x14] sm:$0xf]
        %v574 = vld [vmem:[%s567 + $0x18] sm:$0xf]
        %v575 = vld [vmem:[%s567 + $0x1c] sm:$0xf]
        %v576 = vld [vmem:[%s567 + $0x20] sm:$0xf]
        %v577 = vld [vmem:[%s567 + $0x24] sm:$0xf]
        %v578 = vld [vmem:[%s567 + $0x28] sm:$0xf]
        %v579 = vld [vmem:[%s567 + $0x2c] sm:$0xf]
        %v580 = vld [vmem:[%s567 + $0x30] sm:$0xf]
        %v581 = vld [vmem:[%s567 + $0x34] sm:$0xf]
        %v582 = vld [vmem:[%s567 + $0x38] sm:$0xf]
        %v583 = vld [vmem:[%s567 + $0x3c] sm:$0xf]
        %v585 = vlaneseq
        %v586 = vshrl.u32 %v585, 7
        %v587 = vsub.s32 0, %v586
        %v588 = vrot.slane %v453, %v587
        %v606 = vunpack.c.l.b16 %v568
        %v607 = vunpack.c.l.b16 %v569
        %v608 = vunpack.c.l.b16 %v570
        %v609 = vunpack.c.l.b16 %v571
        %v610 = vunpack.c.l.b16 %v572
        %v611 = vunpack.c.l.b16 %v573
        %v612 = vunpack.c.l.b16 %v574
        %v613 = vunpack.c.l.b16 %v575
        %v614 = vunpack.c.l.b16 %v576
        %v615 = vunpack.c.l.b16 %v577
        %v616 = vunpack.c.l.b16 %v578
        %v617 = vunpack.c.l.b16 %v579
        %v618 = vunpack.c.l.b16 %v580
        %v619 = vunpack.c.l.b16 %v581
        %v620 = vunpack.c.l.b16 %v582
        %v621 = vunpack.c.l.b16 %v583
        %v622 = vpack.c.b16 %v607, %v606
        %v623 = vpack.c.b16 %v609, %v608
        %v624 = vpack.c.b16 %v611, %v610
        %v625 = vpack.c.b16 %v613, %v612
        %v626 = vpack.c.b16 %v615, %v614
        %v627 = vpack.c.b16 %v617, %v616
        %v628 = vpack.c.b16 %v619, %v618
        %v629 = vpack.c.b16 %v621, %v620
        %638 = vmatprep.subr.bf16.mxu0 0
        %639 = vmatpush1.bf16.msra.mxu0 %v622
        %640 = vmatprep.subr.bf16.mxu0 0
        %641 = vmatpush1.bf16.msra.mxu0 %v623
        %642 = vmatprep.subr.bf16.mxu0 0
        %643 = vmatpush1.bf16.msra.mxu0 %v624
        %644 = vmatprep.subr.bf16.mxu0 0
        %645 = vmatpush1.bf16.msra.mxu0 %v625
        %646 = vmatprep.subr.bf16.mxu0 0
        %647 = vmatpush1.bf16.msra.mxu0 %v626
        %648 = vmatprep.subr.bf16.mxu0 0
        %649 = vmatpush1.bf16.msra.mxu0 %v627
        %650 = vmatprep.subr.bf16.mxu0 0
        %651 = vmatpush1.bf16.msra.mxu0 %v628
        %652 = vmatprep.subr.bf16.mxu0 0
        %653 = vmatpush1.bf16.msra.mxu0 %v629
        %654 = vmatprep.subr.bf16.mxu0 0
        %655 = vmatpush1.bf16.msra.mxu0 0
        %656 = vmatprep.subr.bf16.mxu0 0
        %657 = vmatpush1.bf16.msra.mxu0 0
        %658 = vmatprep.subr.bf16.mxu0 0
        %659 = vmatpush1.bf16.msra.mxu0 0
        %660 = vmatprep.subr.bf16.mxu0 0
        %661 = vmatpush1.bf16.msra.mxu0 0
        %662 = vmatprep.subr.bf16.mxu0 0
        %663 = vmatpush1.bf16.msra.mxu0 0
        %664 = vmatprep.subr.bf16.mxu0 0
        %665 = vmatpush1.bf16.msra.mxu0 0
        %666 = vmatprep.subr.bf16.mxu0 0
        %667 = vmatpush1.bf16.msra.mxu0 0
        %668 = vmatprep.subr.bf16.mxu0 0
        %669 = vmatpush1.bf16.msra.mxu0 0
        %670 = vmatprep.mubr.bf16.mxu0 0
        %671 = vmatmul.mubr.bf16.gmra.mrb[0].mxu0 %v566
        %v672 = vpop.f32.mrb[0].mxu0
        %v673 = vadd.f32 %v588, %v672
        %v674 = vpop.f32.mrb[0].mxu0
        %v675 = vpop.f32.mrb[0].mxu0
        %v676 = vpop.f32.mrb[0].mxu0
        %677 = vdwg.mxu0
        %v678 = vmax.f32 %v673, 0.0
        %v679 = vpack.c.bf16 %v678, %v678
        %v680 = vld [vmem:[#allocation8] sm:$0xf]
        %v681 = vld [vmem:[#allocation8 + $0x4] sm:$0xf]
        %v682 = vld [vmem:[#allocation8 + $0x8] sm:$0xf]
        %v683 = vld [vmem:[#allocation8 + $0xc] sm:$0xf]
        %v684 = vld [vmem:[#allocation8 + $0x10] sm:$0xf]
        %v685 = vld [vmem:[#allocation8 + $0x14] sm:$0xf]
        %v686 = vld [vmem:[#allocation8 + $0x18] sm:$0xf]
        %v687 = vld [vmem:[#allocation8 + $0x1c] sm:$0xf]
        %v688 = vld [vmem:[#allocation8 + $0x20] sm:$0xf]
        %v689 = vld [vmem:[#allocation8 + $0x24] sm:$0xf]
        %v690 = vld [vmem:[#allocation8 + $0x28] sm:$0xf]
        %v691 = vld [vmem:[#allocation8 + $0x2c] sm:$0xf]
        %v692 = vld [vmem:[#allocation8 + $0x30] sm:$0xf]
        %v693 = vld [vmem:[#allocation8 + $0x34] sm:$0xf]
        %v694 = vld [vmem:[#allocation8 + $0x38] sm:$0xf]
        %v695 = vld [vmem:[#allocation8 + $0x3c] sm:$0xf]
        %v696 = vld [vmem:[%s6] sm:$0x1]
        %v698 = vlaneseq
        %v699 = vshrl.u32 %v698, 7
        %v700 = vsub.s32 0, %v699
        %v701 = vrot.slane %v696, %v700
        %v719 = vunpack.c.l.b16 %v680
        %v720 = vunpack.c.l.b16 %v681
        %v721 = vunpack.c.l.b16 %v682
        %v722 = vunpack.c.l.b16 %v683
        %v723 = vunpack.c.l.b16 %v684
        %v724 = vunpack.c.l.b16 %v685
        %v725 = vunpack.c.l.b16 %v686
        %v726 = vunpack.c.l.b16 %v687
        %v727 = vunpack.c.l.b16 %v688
        %v728 = vunpack.c.l.b16 %v689
        %v729 = vunpack.c.l.b16 %v690
        %v730 = vunpack.c.l.b16 %v691
        %v731 = vunpack.c.l.b16 %v692
        %v732 = vunpack.c.l.b16 %v693
        %v733 = vunpack.c.l.b16 %v694
        %v734 = vunpack.c.l.b16 %v695
        %v735 = vpack.c.b16 %v720, %v719
        %v736 = vpack.c.b16 %v722, %v721
        %v737 = vpack.c.b16 %v724, %v723
        %v738 = vpack.c.b16 %v726, %v725
        %v739 = vpack.c.b16 %v728, %v727
        %v740 = vpack.c.b16 %v730, %v729
        %v741 = vpack.c.b16 %v732, %v731
        %v742 = vpack.c.b16 %v734, %v733
        %751 = vmatprep.subr.bf16.mxu0 0
        %752 = vmatpush1.bf16.msra.mxu0 %v735
        %753 = vmatprep.subr.bf16.mxu0 0
        %754 = vmatpush1.bf16.msra.mxu0 %v736
        %755 = vmatprep.subr.bf16.mxu0 0
        %756 = vmatpush1.bf16.msra.mxu0 %v737
        %757 = vmatprep.subr.bf16.mxu0 0
        %758 = vmatpush1.bf16.msra.mxu0 %v738
        %759 = vmatprep.subr.bf16.mxu0 0
        %760 = vmatpush1.bf16.msra.mxu0 %v739
        %761 = vmatprep.subr.bf16.mxu0 0
        %762 = vmatpush1.bf16.msra.mxu0 %v740
        %763 = vmatprep.subr.bf16.mxu0 0
        %764 = vmatpush1.bf16.msra.mxu0 %v741
        %765 = vmatprep.subr.bf16.mxu0 0
        %766 = vmatpush1.bf16.msra.mxu0 %v742
        %767 = vmatprep.subr.bf16.mxu0 0
        %768 = vmatpush1.bf16.msra.mxu0 0
        %769 = vmatprep.subr.bf16.mxu0 0
        %770 = vmatpush1.bf16.msra.mxu0 0
        %771 = vmatprep.subr.bf16.mxu0 0
        %772 = vmatpush1.bf16.msra.mxu0 0
        %773 = vmatprep.subr.bf16.mxu0 0
        %774 = vmatpush1.bf16.msra.mxu0 0
        %775 = vmatprep.subr.bf16.mxu0 0
        %776 = vmatpush1.bf16.msra.mxu0 0
        %777 = vmatprep.subr.bf16.mxu0 0
        %778 = vmatpush1.bf16.msra.mxu0 0
        %779 = vmatprep.subr.bf16.mxu0 0
        %780 = vmatpush1.bf16.msra.mxu0 0
        %781 = vmatprep.subr.bf16.mxu0 0
        %782 = vmatpush1.bf16.msra.mxu0 0
        %783 = vmatprep.mubr.bf16.mxu0 0
        %784 = vmatmul.mubr.bf16.gmra.mrb[0].mxu0 %v679
        %v785 = vpop.f32.mrb[0].mxu0
        %v786 = vadd.f32 %v701, %v785
        %v787 = vpop.f32.mrb[0].mxu0
        %v788 = vpop.f32.mrb[0].mxu0
        %v789 = vpop.f32.mrb[0].mxu0
        %790 = vdwg.mxu0
        %v791 = vmax.f32 %v786, 0.0
        %792 = vst [vmem:[%s337] sm:$0xff] %v791
        %s793 = sand.u32 %s186, 1
        %s794 = scalar_lea.sflag [#allocation4], %s793
        %s795 = sand.u32 %s186, 1
        %s796 = smul.addr %s795, 8
        %s797 = scalar_lea.vmem [#allocation10], %s796
        // Predicated region
        $region65: #{tpu_custom_call.1} parent=47 // pred_check
          %p798 = pneg %p196
        $region66: #{tpu_custom_call.1} parent=47 // pred_check_branch
          %800 = sbr.rel (%p798) target = $region68
        $region67: #{tpu_custom_call.1} parent=47 // pred_region
          %s802 = ssub.s32 128, 128
          %803 = vsyncadd %s794, %s802
          %s804 = smul.addr %s26, 128
          %s805 = scalar_lea.hbm %s7, %s804
          %s807 = sshll.u32 %s797, 4
          %s808 = int_to_ptr.vmem [resolvable:$true] %s807
          %810 = dma.vmem_to_hbm [thread:$0]  %s808, 128, %s805, %s794
        $region68: #{tpu_custom_call.1} parent=47 // pred_fallthru
          _
      $region48: #{tpu_custom_call.1} parent=5 // pred_fallthru
        _
      %p811 = scmp.le.s32.totalorder 2, %s21
      // Predicated region
      $region69: #{tpu_custom_call.1} parent=5 // pred_check
        %p812 = pneg %p811
      $region70: #{tpu_custom_call.1} parent=5 // pred_check_branch
        %814 = sbr.rel (%p812) target = $region72
      $region71: #{tpu_custom_call.1} parent=5 // pred_region
        %s815 = ssub.s32 %s21, 2
        // Predicated region
        $region73: #{tpu_custom_call.1} parent=71 // pred_check
          %p816 = pneg %p202
        $region74: #{tpu_custom_call.1} parent=71 // pred_check_branch
          %818 = sbr.rel (%p816) target = $region76
        $region75: #{tpu_custom_call.1} parent=71 // pred_region
          %s819 = sand.u32 %s187, 1
          %s820 = scalar_lea.sflag [#allocation4], %s819
          %s821 = sand.u32 %s187, 1
          %s822 = smul.addr %s821, 8
          %s823 = scalar_lea.vmem [#allocation10], %s822
          %824 = dma.done %s820, 128
        $region76: #{tpu_custom_call.1} parent=71 // pred_fallthru
          _
      $region72: #{tpu_custom_call.1} parent=5 // pred_fallthru
        _
    $region6: #{tpu_custom_call.1} parent=1 // loop_footer
      %s25 = sadd.s32 1, %s21
    $region7: #{tpu_custom_call.1} parent=1 // loop_footer_branch
      %20 = sbr.rel target = $region3
    $region8: #{tpu_custom_call.1} parent=1 // loop_exit
      _
    %825 = vsyncpa [#allocation3], 1
    %s826 = scalar_lea.sflag [#allocation3], 1
    %827 = vsyncpa %s826, 1
    %828 = vsyncpa [#allocation6], 1
    %829 = vsyncpa [#allocation9], 1
    %830 = vsyncpa [#allocation4], 1
    %s831 = scalar_lea.sflag [#allocation4], 1
    %832 = vsyncpa %s831, 1

</llo_original>
